<compile_context>
chip_gen: v6e
topology: v6e:2x2x1
jax: 0.10.0
libtpu: 0.0.40
codegen_flags: <defaults>
</compile_context>

<pallas_src>
import jax
import jax.numpy as jnp
from jax.experimental import pallas as pl
from jax.experimental.pallas import tpu as pltpu


def _vq_kernel(x_ref, e2_ref, et_ref, esq_ref, xq_ref, idx_ref, sse_ref):
    # x tile, channel-major: (D, TN) with tokens on the lane axis.
    x_cm = x_ref[0].astype(jnp.float32)
    K = e2_ref.shape[0]

    # score[k, t] = 2 <e_k, x_t> - ||e_k||^2
    # (row-constant -||x_t||^2 of the reference formula is dropped: it cannot
    #  change which k wins; 2*E and ||e||^2 arrive precomputed from the wrapper.)
    score = jnp.dot(e2_ref[...], x_cm.astype(e2_ref.dtype),
                    preferred_element_type=jnp.float32)            # (K, TN) f32
    score = score - esq_ref[...]                                   # (K,1) lane-bcast

    # First-occurrence argmax along the codebook (sublane) axis — cheap here:
    # axis-0 reductions are mostly elementwise max across vreg rows.
    smax = jnp.max(score, axis=0, keepdims=True)                   # (1, TN)
    k_iota = jax.lax.broadcasted_iota(jnp.int32, score.shape, 0)   # (K, TN)
    idx = jnp.min(jnp.where(score == smax, k_iota, K),
                  axis=0, keepdims=True).astype(jnp.int32)         # (1, TN)
    idx_ref[...] = idx[None]                                       # lane-dense store

    # Codebook gather as a one-hot matmul: contraction over K feeds the MXU
    # well; kept in f32 so x_q is exactly a codebook row.
    onehot = (k_iota == idx).astype(jnp.float32)                   # (K, TN)
    xq = jnp.dot(et_ref[...], onehot,
                 preferred_element_type=jnp.float32)               # (D, TN)
    xq_ref[0] = xq.astype(xq_ref.dtype)

    # Per-token squared error (summed over channels) -> lane-dense partials,
    # reduced to the loss scalar outside the kernel (no resident accumulator).
    diff = xq - x_cm
    sse_ref[...] = jnp.sum(diff * diff, axis=0, keepdims=True)[None]


def vector_quantize_forward(x_nchw, embedding, beta=0.25, tile_n=512,
                            score_dtype=jnp.bfloat16):
    """Forward of VectorQuantize (accept_image_fmap=True, L2 distance, temp=0)."""
    B, C, H, W = x_nchw.shape
    K, D = embedding.shape
    assert C == D, "channel dim must equal codebook_dim"

    HW = H * W
    if HW <= tile_n:
        tile_n = HW
    assert HW % tile_n == 0, "H*W must be divisible by tile_n for this kernel"
    n_tiles = HW // tile_n

    # b c h w -> b c (h w): pure reshape, no transpose / extra HBM round trip.
    x3 = x_nchw.reshape(B, C, HW)

    # One-time precompute (tiny XLA ops), hoisted out of the per-tile body.
    emb_f32 = embedding.astype(jnp.float32)
    e2 = (2.0 * emb_f32).astype(score_dtype)                    # (K, D) score LHS
    e_t = emb_f32.T                                             # (D, K) gather LHS
    e_sq = jnp.sum(emb_f32 * emb_f32, axis=-1, keepdims=True)   # (K, 1)

    xq3, idx3, sse_tok = pl.pallas_call(
        _vq_kernel,
        out_shape=(
            jax.ShapeDtypeStruct((B, C, HW), x_nchw.dtype),     # quantized (ch-major)
            jax.ShapeDtypeStruct((B, 1, HW), jnp.int32),        # codebook indices
            jax.ShapeDtypeStruct((B, 1, HW), jnp.float32),      # per-token SSE
        ),
        grid_spec=pltpu.PrefetchScalarGridSpec(
            num_scalar_prefetch=0,
            grid=(B, n_tiles),
            in_specs=[
                pl.BlockSpec((1, C, tile_n), lambda b, i: (b, 0, i)),  # x tile
                pl.BlockSpec((K, D), lambda b, i: (0, 0)),             # 2*E
                pl.BlockSpec((D, K), lambda b, i: (0, 0)),             # E^T
                pl.BlockSpec((K, 1), lambda b, i: (0, 0)),             # ||e||^2
            ],
            out_specs=[
                pl.BlockSpec((1, C, tile_n), lambda b, i: (b, 0, i)),
                pl.BlockSpec((1, 1, tile_n), lambda b, i: (b, 0, i)),
                pl.BlockSpec((1, 1, tile_n), lambda b, i: (b, 0, i)),
            ],
        ),
        compiler_params=pltpu.CompilerParams(
            dimension_semantics=("parallel", "parallel"),
            vmem_limit_bytes=48 * 1024 * 1024,
        ),
    )(x3, e2, e_t, e_sq)

    # loss = beta * mean((x_q.detach() - x)^2) + mean((x_q - x.detach())^2)
    # forward value (detach only changes gradients); orthogonal_reg_weight == 0.
    loss = (1.0 + beta) * jnp.sum(sse_tok) / jnp.float32(B * HW * D)

    # straight-through estimator: forward value of x + (x_q - x).detach() is x_q.
    x_q = xq3.reshape(B, C, H, W)          # already channel-major == NCHW
    embed_ind = idx3.reshape(B, H, W)
    return x_q, loss, (None, None, embed_ind)


if __name__ == "__main__":
    key = jax.random.PRNGKey(0)
    k_x, k_e = jax.random.split(key)

    B, C, H, W = 2, 4, 16, 16
    codebook_size = 256
    codebook_dim = C

    x = jax.random.normal(k_x, (B, C, H, W), dtype=jnp.float32)
    # nn.Embedding weight initialized uniform(-1/codebook_size, 1/codebook_size)
    embedding = jax.random.uniform(
        k_e, (codebook_size, codebook_dim), dtype=jnp.float32,
        minval=-1.0 / codebook_size, maxval=1.0 / codebook_size)

    x_q, loss, (_, _, embed_ind) = vector_quantize_forward(x, embedding, beta=0.25)
    jax.block_until_ready((x_q, loss, embed_ind))

    assert x_q.shape == (B, C, H, W)
    assert embed_ind.shape == (B, H, W)
    assert loss.shape == ()
    print("KERNEL_OK")
</pallas_src>

<mosaic_0001>
module attributes {stable_mosaic.version = 11 : i64} {
  func.func @_vq_kernel(%arg0: i32, %arg1: i32, %arg2: memref<1x4x256xf32, #tpu.memory_space<vmem>>, %arg3: memref<256x4xbf16, #tpu.memory_space<vmem>>, %arg4: memref<4x256xf32, #tpu.memory_space<vmem>>, %arg5: memref<256x1xf32, #tpu.memory_space<vmem>>, %arg6: memref<1x4x256xf32, #tpu.memory_space<vmem>>, %arg7: memref<1x1x256xi32, #tpu.memory_space<vmem>>, %arg8: memref<1x1x256xf32, #tpu.memory_space<vmem>>) attributes {dimension_semantics = [#tpu.dimension_semantics<parallel>, #tpu.dimension_semantics<parallel>], iteration_bounds = array<i64: 2, 1>, scalar_prefetch = 0 : i64, scratch_operands = 0 : i64, tpu.core_type = #tpu.core_type<tc>, window_params = [{transform_indices = @transform_0, window_bounds = array<i64: 1, 4, 256>}, {pipeline_mode = #tpu.pipeline_mode<synchronous>, transform_indices = @transform_1, window_bounds = array<i64: 256, 4>}, {pipeline_mode = #tpu.pipeline_mode<synchronous>, transform_indices = @transform_2, window_bounds = array<i64: 4, 256>}, {pipeline_mode = #tpu.pipeline_mode<synchronous>, transform_indices = @transform_3, window_bounds = array<i64: 256, 1>}, {transform_indices = @transform_4, window_bounds = array<i64: 1, 4, 256>}, {transform_indices = @transform_5, window_bounds = array<i64: 1, 1, 256>}, {transform_indices = @transform_6, window_bounds = array<i64: 1, 1, 256>}]} {
    %c0 = arith.constant 0 : index
    %c0_0 = arith.constant 0 : index
    %c0_1 = arith.constant 0 : index
    %0 = vector.load %arg2[%c0, %c0_0, %c0_1] : memref<1x4x256xf32, #tpu.memory_space<vmem>>, vector<1x4x256xf32>
    %1 = vector.shape_cast %0 : vector<1x4x256xf32> to vector<4x256xf32>
    %c0_2 = arith.constant 0 : index
    %c0_3 = arith.constant 0 : index
    %2 = vector.load %arg3[%c0_2, %c0_3] : memref<256x4xbf16, #tpu.memory_space<vmem>>, vector<256x4xbf16>
    %3 = arith.truncf %1 : vector<4x256xf32> to vector<4x256xbf16>
    %cst = arith.constant dense<0.000000e+00> : vector<256x256xf32>
    %4 = tpu.matmul %2, %3, %cst {dimension_numbers = #tpu.dot_dimension_numbers<[1], [0], [0], [1], [0, 0, 1, 1], [], []>} : vector<256x4xbf16>, vector<4x256xbf16>, vector<256x256xf32> -> vector<256x256xf32>
    %c0_4 = arith.constant 0 : index
    %c0_5 = arith.constant 0 : index
    %5 = vector.load %arg5[%c0_4, %c0_5] : memref<256x1xf32, #tpu.memory_space<vmem>>, vector<256x1xf32>
    %6 = vector.broadcast %5 : vector<256x1xf32> to vector<256x256xf32>
    %7 = arith.subf %4, %6 : vector<256x256xf32>
    %cst_6 = arith.constant dense<0xFF800000> : vector<256xf32>
    %8 = vector.multi_reduction <maximumf>, %7, %cst_6 [0] : vector<256x256xf32> to vector<256xf32>
    %9 = vector.shape_cast %8 : vector<256xf32> to vector<1x256xf32>
    %10 = tpu.iota {dimensions = array<i32: 0>} : vector<256x256xi32>
    %11 = vector.broadcast %9 : vector<1x256xf32> to vector<256x256xf32>
    %12 = arith.cmpf oeq, %7, %11 : vector<256x256xf32>
    %c256_i32 = arith.constant 256 : i32
    %13 = vector.broadcast %c256_i32 : i32 to vector<256x256xi32>
    %14 = arith.select %12, %10, %13 : vector<256x256xi1>, vector<256x256xi32>
    %cst_7 = arith.constant dense<2147483647> : vector<256xi32>
    %15 = vector.multi_reduction <minsi>, %14, %cst_7 [0] : vector<256x256xi32> to vector<256xi32>
    %16 = vector.shape_cast %15 : vector<256xi32> to vector<1x256xi32>
    %17 = vector.shape_cast %16 : vector<1x256xi32> to vector<1x1x256xi32>
    %c0_8 = arith.constant 0 : index
    %c0_9 = arith.constant 0 : index
    %c0_10 = arith.constant 0 : index
    %18 = vector.load %arg7[%c0_8, %c0_9, %c0_10] : memref<1x1x256xi32, #tpu.memory_space<vmem>>, vector<1x1x256xi32>
    tpu.vector_store %arg7[%c0_8, %c0_9, %c0_10], %17 {strides = array<i32>} : memref<1x1x256xi32, #tpu.memory_space<vmem>>, vector<1x1x256xi32>,
    %19 = vector.broadcast %16 : vector<1x256xi32> to vector<256x256xi32>
    %20 = arith.cmpi eq, %10, %19 : vector<256x256xi32>
    %21 = arith.extui %20 : vector<256x256xi1> to vector<256x256xi32>
    %22 = arith.sitofp %21 : vector<256x256xi32> to vector<256x256xf32>
    %c0_11 = arith.constant 0 : index
    %c0_12 = arith.constant 0 : index
    %23 = vector.load %arg4[%c0_11, %c0_12] : memref<4x256xf32, #tpu.memory_space<vmem>>, vector<4x256xf32>
    %cst_13 = arith.constant dense<0.000000e+00> : vector<4x256xf32>
    %24 = tpu.matmul %23, %22, %cst_13 {dimension_numbers = #tpu.dot_dimension_numbers<[1], [0], [0], [1], [0, 0, 1, 1], [], []>} : vector<4x256xf32>, vector<256x256xf32>, vector<4x256xf32> -> vector<4x256xf32>
    %c0_14 = arith.constant 0 : index
    %c0_15 = arith.constant 0 : index
    %c0_16 = arith.constant 0 : index
    %25 = vector.load %arg6[%c0_14, %c0_15, %c0_16] : memref<1x4x256xf32, #tpu.memory_space<vmem>>, vector<1x4x256xf32>
    %26 = vector.shape_cast %25 : vector<1x4x256xf32> to vector<4x256xf32>
    %27 = vector.shape_cast %24 : vector<4x256xf32> to vector<1x4x256xf32>
    tpu.vector_store %arg6[%c0_14, %c0_15, %c0_16], %27 {strides = array<i32>} : memref<1x4x256xf32, #tpu.memory_space<vmem>>, vector<1x4x256xf32>,
    %28 = arith.subf %24, %1 : vector<4x256xf32>
    %29 = arith.mulf %28, %28 : vector<4x256xf32>
    %cst_17 = arith.constant dense<0.000000e+00> : vector<256xf32>
    %30 = vector.multi_reduction <add>, %29, %cst_17 [0] : vector<4x256xf32> to vector<256xf32>
    %31 = vector.shape_cast %30 : vector<256xf32> to vector<1x256xf32>
    %32 = vector.shape_cast %31 : vector<1x256xf32> to vector<1x1x256xf32>
    %c0_18 = arith.constant 0 : index
    %c0_19 = arith.constant 0 : index
    %c0_20 = arith.constant 0 : index
    %33 = vector.load %arg8[%c0_18, %c0_19, %c0_20] : memref<1x1x256xf32, #tpu.memory_space<vmem>>, vector<1x1x256xf32>
    tpu.vector_store %arg8[%c0_18, %c0_19, %c0_20], %32 {strides = array<i32>} : memref<1x1x256xf32, #tpu.memory_space<vmem>>, vector<1x1x256xf32>,
    return
  }
  func.func @transform_0(%arg0: i32, %arg1: i32) -> (i32, i32, i32) {
    %c0_i32 = arith.constant 0 : i32
    %c0_i32_0 = arith.constant 0 : i32
    return %arg0, %c0_i32, %arg1 : i32, i32, i32
  }
  func.func @transform_1(%arg0: i32, %arg1: i32) -> (i32, i32) {
    %c0_i32 = arith.constant 0 : i32
    %c0_i32_0 = arith.constant 0 : i32
    %c0_i32_1 = arith.constant 0 : i32
    return %c0_i32, %c0_i32_0 : i32, i32
  }
  func.func @transform_2(%arg0: i32, %arg1: i32) -> (i32, i32) {
    %c0_i32 = arith.constant 0 : i32
    %c0_i32_0 = arith.constant 0 : i32
    %c0_i32_1 = arith.constant 0 : i32
    return %c0_i32, %c0_i32_0 : i32, i32
  }
  func.func @transform_3(%arg0: i32, %arg1: i32) -> (i32, i32) {
    %c0_i32 = arith.constant 0 : i32
    %c0_i32_0 = arith.constant 0 : i32
    %c0_i32_1 = arith.constant 0 : i32
    return %c0_i32, %c0_i32_0 : i32, i32
  }
  func.func @transform_4(%arg0: i32, %arg1: i32) -> (i32, i32, i32) {
    %c0_i32 = arith.constant 0 : i32
    %c0_i32_0 = arith.constant 0 : i32
    return %arg0, %c0_i32, %arg1 : i32, i32, i32
  }
  func.func @transform_5(%arg0: i32, %arg1: i32) -> (i32, i32, i32) {
    %c0_i32 = arith.constant 0 : i32
    %c0_i32_0 = arith.constant 0 : i32
    return %arg0, %c0_i32, %arg1 : i32, i32, i32
  }
  func.func @transform_6(%arg0: i32, %arg1: i32) -> (i32, i32, i32) {
    %c0_i32 = arith.constant 0 : i32
    %c0_i32_0 = arith.constant 0 : i32
    return %arg0, %c0_i32, %arg1 : i32, i32, i32
  }
}

</mosaic_0001>

<llo_original>
// kernel: tpu_custom_call.1
$region0: #{tpu_custom_call.1}
  #allocation0 [shape = 'u32[]', space=smem, size = 0x4, offset = 0x4, fixed_abs, tag = 'smem constant byte address 0x4 - core index']
  #allocation1 [shape = 'u32[144,128]{1,0:T(1,128)}', space=vmem, size = 0x12000, scoped, tag = 'internal scratch']
  %s0 = inlined_call_operand.vmem [shape: f32[2,4,256], index: 0, kind: input, shape index: {}]
  %s1 = inlined_call_operand.vmem [shape: bf16[256,4], index: 1, kind: input, shape index: {}]
  %s2 = inlined_call_operand.vmem [shape: f32[4,256], index: 2, kind: input, shape index: {}]
  %s3 = inlined_call_operand.vmem [shape: f32[256,1], index: 3, kind: input, shape index: {}]
  %s4 = inlined_call_operand.hbm [shape: f32[2,4,256], index: 4, kind: output, shape index: {0}]
  %s5 = inlined_call_operand.hbm [shape: s32[2,1,256], index: 5, kind: output, shape index: {1}]
  %s6 = inlined_call_operand.hbm [shape: f32[2,1,256], index: 6, kind: output, shape index: {2}]
  %7 = xla_tuple %s4, %s5, %s6
  %s8 = sld [smem:[#allocation0]]
  $region65: #{tpu_custom_call.1} parent=0
    _
  %s10 = ssub.s32 1, %s8
  %s11 = scalar_select 0, %s10, %s8
  $region1: #{tpu_custom_call.1} parent=0
    #allocation2 [shape = 'u8[8192]{0}', space=vmem, size = 0x2000, scoped, tag = 'output window, operand 0']
    #allocation3 [shape = 's32[2]{0}', space=sflag, size = 0x8, scoped, tag = 'scoped memory for tpu_custom_call.1']
    #allocation4 [shape = 'u8[2048]{0}', space=vmem, size = 0x800, scoped, tag = 'output window, operand 1']
    #allocation5 [shape = 's32[2]{0}', space=sflag, size = 0x8, scoped, tag = 'scoped memory for tpu_custom_call.1']
    #allocation6 [shape = 'u8[2048]{0}', space=vmem, size = 0x800, scoped, tag = 'output window, operand 2']
    %12 = vsyncpa [#allocation3], 0
    %s13 = scalar_lea.sflag [#allocation3], 1
    %14 = vsyncpa %s13, 0
    %15 = vsyncpa [#allocation5], 0
    %s16 = scalar_lea.sflag [#allocation5], 1
    %17 = vsyncpa %s16, 0
    loop: start=0, step=1, limit=4
    $region2: #{tpu_custom_call.1} parent=1 // loop_pre_header
      _
    $region3: #{tpu_custom_call.1} parent=1 // loop_header
      %s19 = sphi 0, %s23
      %p20 = scmp.ge.s32.totalorder %s19, 4
      %s26 = sphi 0, %s38
      %s27 = sphi 0, %s34
      %s28 = sphi 0, %s26
      %s29 = sphi 0, %s27
      %s30 = sphi 0, %s28
      %s31 = sphi 0, %s29
      %s43 = sphi 0, %s45
      %s46 = sphi 0, %s43
      %s47 = sphi 0, %s46
      %s63 = sphi 0, %s47
      %s67 = sphi 0, %s67
      %s69 = sphi 0, %s67
      %s70 = sphi 0, %s69
      %s84 = sphi 0, %s70
      %s88 = sphi 0, %s88
      %s90 = sphi 0, %s88
      %s91 = sphi 0, %s90
      %s105 = sphi 0, %s91
      %s109 = sphi 0, %s109
      %s111 = sphi 0, %s109
      %s112 = sphi 0, %s111
      %s126 = sphi 0, %s112
      %s134 = sphi 0, %s136
      %s137 = sphi 0, %s134
      %s138 = sphi 0, %s137
      %s154 = sphi 0, %s138
      %s162 = sphi 0, %s164
      %s165 = sphi 0, %s162
      %s166 = sphi 0, %s165
      %s182 = sphi 0, %s166
      %s190 = sphi 0, %s192
      %s193 = sphi 0, %s190
      %s194 = sphi 0, %s193
      %s210 = sphi 0, %s194
    $region4: #{tpu_custom_call.1} parent=1 // loop_header_branch
      %22 = sbr.rel (%p20) target = $region8
    $region5: #{tpu_custom_call.1} parent=1 // loop_body
      %s24 = ssub.s32 %s19, 1
      %s25 = ssub.s32 %s19, 2
      %s32 = sadd.s32 1, %s27
      %p33 = scmp.ge.s32.totalorder %s32, 1
      %s34 = scalar_select %p33, 0, %s32
      %s35 = sadd.s32 1, %s26
      %s36 = scalar_select %p33, %s35, %s26
      %p37 = scmp.ge.s32.totalorder %s36, 2
      %s38 = scalar_select %p37, 0, %s36
      %s39 = ssub.s32 %s26, %s38
      %s40 = ssub.s32 %s27, %s34
      %s41 = sor.u32 %s39, %s40
      %p42 = scmp.eq.s32.totalorder %s41, 0
      %s44 = sadd.s32 %s43, 1
      %s45 = scalar_select %p42, %s43, %s44
      %p48 = pneg %p42
      %p49 = scmp.eq.s32.totalorder %s19, 1
      %p50 = por %p48, %p49
      %p51 = scmp.ne.s32.totalorder %s43, %s46
      %p52 = scmp.eq.s32.totalorder %s19, 0
      %p53 = por %p51, %p52
      %p54 = scmp.ne.s32.totalorder %s43, %s46
      %p55 = scmp.eq.s32.totalorder %s24, 1
      %p56 = por %p54, %p55
      %p57 = scmp.ne.s32.totalorder %s46, %s47
      %p58 = scmp.eq.s32.totalorder %s24, 0
      %p59 = por %p57, %p58
      %p60 = scmp.ne.s32.totalorder %s46, %s47
      %p61 = scmp.eq.s32.totalorder %s25, 1
      %p62 = por %p60, %p61
      %p64 = scmp.ne.s32.totalorder %s47, %s63
      %p65 = scmp.eq.s32.totalorder %s25, 0
      %p66 = por %p64, %p65
      %s68 = sadd.s32 %s67, 1
      %p71 = scmp.eq.s32.totalorder %s19, 1
      %p72 = scmp.ne.s32.totalorder %s67, %s69
      %p73 = scmp.eq.s32.totalorder %s19, 0
      %p74 = por %p72, %p73
      %p75 = scmp.ne.s32.totalorder %s67, %s69
      %p76 = scmp.eq.s32.totalorder %s24, 1
      %p77 = por %p75, %p76
      %p78 = scmp.ne.s32.totalorder %s69, %s70
      %p79 = scmp.eq.s32.totalorder %s24, 0
      %p80 = por %p78, %p79
      %p81 = scmp.ne.s32.totalorder %s69, %s70
      %p82 = scmp.eq.s32.totalorder %s25, 1
      %p83 = por %p81, %p82
      %p85 = scmp.ne.s32.totalorder %s70, %s84
      %p86 = scmp.eq.s32.totalorder %s25, 0
      %p87 = por %p85, %p86
      %s89 = sadd.s32 %s88, 1
      %p92 = scmp.eq.s32.totalorder %s19, 1
      %p93 = scmp.ne.s32.totalorder %s88, %s90
      %p94 = scmp.eq.s32.totalorder %s19, 0
      %p95 = por %p93, %p94
      %p96 = scmp.ne.s32.totalorder %s88, %s90
      %p97 = scmp.eq.s32.totalorder %s24, 1
      %p98 = por %p96, %p97
      %p99 = scmp.ne.s32.totalorder %s90, %s91
      %p100 = scmp.eq.s32.totalorder %s24, 0
      %p101 = por %p99, %p100
      %p102 = scmp.ne.s32.totalorder %s90, %s91
      %p103 = scmp.eq.s32.totalorder %s25, 1
      %p104 = por %p102, %p103
      %p106 = scmp.ne.s32.totalorder %s91, %s105
      %p107 = scmp.eq.s32.totalorder %s25, 0
      %p108 = por %p106, %p107
      %s110 = sadd.s32 %s109, 1
      %p113 = scmp.eq.s32.totalorder %s19, 1
      %p114 = scmp.ne.s32.totalorder %s109, %s111
      %p115 = scmp.eq.s32.totalorder %s19, 0
      %p116 = por %p114, %p115
      %p117 = scmp.ne.s32.totalorder %s109, %s111
      %p118 = scmp.eq.s32.totalorder %s24, 1
      %p119 = por %p117, %p118
      %p120 = scmp.ne.s32.totalorder %s111, %s112
      %p121 = scmp.eq.s32.totalorder %s24, 0
      %p122 = por %p120, %p121
      %p123 = scmp.ne.s32.totalorder %s111, %s112
      %p124 = scmp.eq.s32.totalorder %s25, 1
      %p125 = por %p123, %p124
      %p127 = scmp.ne.s32.totalorder %s112, %s126
      %p128 = scmp.eq.s32.totalorder %s25, 0
      %p129 = por %p127, %p128
      %s130 = ssub.s32 %s26, %s38
      %s131 = ssub.s32 %s27, %s34
      %s132 = sor.u32 %s130, %s131
      %p133 = scmp.eq.s32.totalorder %s132, 0
      %s135 = sadd.s32 %s134, 1
      %s136 = scalar_select %p133, %s134, %s135
      %p139 = pneg %p133
      %p140 = scmp.eq.s32.totalorder %s19, 1
      %p141 = por %p139, %p140
      %p142 = scmp.ne.s32.totalorder %s134, %s137
      %p143 = scmp.eq.s32.totalorder %s19, 0
      %p144 = por %p142, %p143
      %p145 = scmp.ne.s32.totalorder %s134, %s137
      %p146 = scmp.eq.s32.totalorder %s24, 1
      %p147 = por %p145, %p146
      %p148 = scmp.ne.s32.totalorder %s137, %s138
      %p149 = scmp.eq.s32.totalorder %s24, 0
      %p150 = por %p148, %p149
      %p151 = scmp.ne.s32.totalorder %s137, %s138
      %p152 = scmp.eq.s32.totalorder %s25, 1
      %p153 = por %p151, %p152
      %p155 = scmp.ne.s32.totalorder %s138, %s154
      %p156 = scmp.eq.s32.totalorder %s25, 0
      %p157 = por %p155, %p156
      %s158 = ssub.s32 %s26, %s38
      %s159 = ssub.s32 %s27, %s34
      %s160 = sor.u32 %s158, %s159
      %p161 = scmp.eq.s32.totalorder %s160, 0
      %s163 = sadd.s32 %s162, 1
      %s164 = scalar_select %p161, %s162, %s163
      %p167 = pneg %p161
      %p168 = scmp.eq.s32.totalorder %s19, 1
      %p169 = por %p167, %p168
      %p170 = scmp.ne.s32.totalorder %s162, %s165
      %p171 = scmp.eq.s32.totalorder %s19, 0
      %p172 = por %p170, %p171
      %p173 = scmp.ne.s32.totalorder %s162, %s165
      %p174 = scmp.eq.s32.totalorder %s24, 1
      %p175 = por %p173, %p174
      %p176 = scmp.ne.s32.totalorder %s165, %s166
      %p177 = scmp.eq.s32.totalorder %s24, 0
      %p178 = por %p176, %p177
      %p179 = scmp.ne.s32.totalorder %s165, %s166
      %p180 = scmp.eq.s32.totalorder %s25, 1
      %p181 = por %p179, %p180
      %p183 = scmp.ne.s32.totalorder %s166, %s182
      %p184 = scmp.eq.s32.totalorder %s25, 0
      %p185 = por %p183, %p184
      %s186 = ssub.s32 %s26, %s38
      %s187 = ssub.s32 %s27, %s34
      %s188 = sor.u32 %s186, %s187
      %p189 = scmp.eq.s32.totalorder %s188, 0
      %s191 = sadd.s32 %s190, 1
      %s192 = scalar_select %p189, %s190, %s191
      %p195 = pneg %p189
      %p196 = scmp.eq.s32.totalorder %s19, 1
      %p197 = por %p195, %p196
      %p198 = scmp.ne.s32.totalorder %s190, %s193
      %p199 = scmp.eq.s32.totalorder %s19, 0
      %p200 = por %p198, %p199
      %p201 = scmp.ne.s32.totalorder %s190, %s193
      %p202 = scmp.eq.s32.totalorder %s24, 1
      %p203 = por %p201, %p202
      %p204 = scmp.ne.s32.totalorder %s193, %s194
      %p205 = scmp.eq.s32.totalorder %s24, 0
      %p206 = por %p204, %p205
      %p207 = scmp.ne.s32.totalorder %s193, %s194
      %p208 = scmp.eq.s32.totalorder %s25, 1
      %p209 = por %p207, %p208
      %p211 = scmp.ne.s32.totalorder %s194, %s210
      %p212 = scmp.eq.s32.totalorder %s25, 0
      %p213 = por %p211, %p212
      %p214 = scmp.le.s32.totalorder 1, %s19
      %p215 = scmp.lt.s32.totalorder %s19, 3
      %p216 = pnand %p214, %p215
      %p217 = pneg %p216
      // Predicated region
      $region9: #{tpu_custom_call.1} parent=5 // pred_check
        _
      $region10: #{tpu_custom_call.1} parent=5 // pred_check_branch
        %219 = sbr.rel (%p216) target = $region12
      $region11: #{tpu_custom_call.1} parent=5 // pred_region
        %s220 = ssub.s32 %s19, 1
        // Predicated region
        $region13: #{tpu_custom_call.1} parent=11 // pred_check
          %p221 = pneg %p80
        $region14: #{tpu_custom_call.1} parent=11 // pred_check_branch
          %223 = sbr.rel (%p221) target = $region16
        $region15: #{tpu_custom_call.1} parent=11 // pred_region
          _
        $region16: #{tpu_custom_call.1} parent=11 // pred_fallthru
          _
        // Predicated region
        $region17: #{tpu_custom_call.1} parent=11 // pred_check
          %p224 = pneg %p101
        $region18: #{tpu_custom_call.1} parent=11 // pred_check_branch
          %226 = sbr.rel (%p224) target = $region20
        $region19: #{tpu_custom_call.1} parent=11 // pred_region
          _
        $region20: #{tpu_custom_call.1} parent=11 // pred_fallthru
          _
        // Predicated region
        $region21: #{tpu_custom_call.1} parent=11 // pred_check
          %p227 = pneg %p122
        $region22: #{tpu_custom_call.1} parent=11 // pred_check_branch
          %229 = sbr.rel (%p227) target = $region24
        $region23: #{tpu_custom_call.1} parent=11 // pred_region
          _
        $region24: #{tpu_custom_call.1} parent=11 // pred_fallthru
          _
      $region12: #{tpu_custom_call.1} parent=5 // pred_fallthru
        _
      %p230 = scmp.lt.s32.totalorder %s19, 2
      // Predicated region
      $region25: #{tpu_custom_call.1} parent=5 // pred_check
        %p231 = pneg %p230
      $region26: #{tpu_custom_call.1} parent=5 // pred_check_branch
        %233 = sbr.rel (%p231) target = $region28
      $region27: #{tpu_custom_call.1} parent=5 // pred_region
        // Predicated region
        $region29: #{tpu_custom_call.1} parent=27 // pred_check
          %p234 = pneg %p53
        $region30: #{tpu_custom_call.1} parent=27 // pred_check_branch
          %236 = sbr.rel (%p234) target = $region32
        $region31: #{tpu_custom_call.1} parent=27 // pred_region
          %s237 = smul.u32 2, %s27
          %p238 = scmp.lt.s32.totalorder %s26, 1
          %s239 = scalar_select %p238, %s26, 1
          %p240 = scmp.lt.s32.totalorder %s237, 1
          %s241 = scalar_select %p240, %s237, 1
          %s242 = smul.addr %s239, 2
          %s243 = sadd.s32 %s241, %s242
          %s244 = smul.addr %s243, 4
          %s245 = scalar_lea.vmem %s0, %s244
          %s246 = smul.u32 2, %s27
        $region32: #{tpu_custom_call.1} parent=27 // pred_fallthru
          _
      $region28: #{tpu_custom_call.1} parent=5 // pred_fallthru
        _
      %p247 = scmp.le.s32.totalorder 1, %s19
      %p248 = scmp.lt.s32.totalorder %s19, 3
      %p249 = pnand %p247, %p248
      %p250 = pneg %p249
      // Predicated region
      $region33: #{tpu_custom_call.1} parent=5 // pred_check
        _
      $region34: #{tpu_custom_call.1} parent=5 // pred_check_branch
        %252 = sbr.rel (%p249) target = $region36
      $region35: #{tpu_custom_call.1} parent=5 // pred_region
        %s253 = ssub.s32 %s19, 1
        %s254 = smul.u32 2, %s29
        %p255 = scmp.lt.s32.totalorder %s28, 1
        %s256 = scalar_select %p255, %s28, 1
        %p257 = scmp.lt.s32.totalorder %s254, 1
        %s258 = scalar_select %p257, %s254, 1
        %s259 = smul.addr %s256, 2
        %s260 = sadd.s32 %s258, %s259
        %s261 = smul.addr %s260, 4
        %s262 = scalar_lea.vmem %s0, %s261
        %p263 = pneg %p59
        %p264 = pneg %p56
        %p265 = pneg %p80
        %p266 = pneg %p77
        %p267 = pneg %p101
        %p268 = pneg %p98
        %p269 = pneg %p122
        %p270 = pneg %p119
        %p271 = pneg %p150
        %p272 = pneg %p147
        %s273 = sand.u32 %s137, 1
        %s274 = scalar_lea.sflag [#allocation3], %s273
        %s275 = sand.u32 %s137, 1
        %s276 = smul.addr %s275, 8
        %s277 = scalar_lea.vmem [#allocation2], %s276
        %p278 = pneg %p178
        %p279 = pneg %p175
        %s280 = sand.u32 %s24, 1
        %s281 = scalar_lea.sflag [#allocation5], %s280
        %s282 = sand.u32 %s165, 1
        %s283 = smul.addr %s282, 2
        %s284 = scalar_lea.vmem [#allocation4], %s283
        %p285 = pneg %p206
        %p286 = pneg %p203
        %s287 = sand.u32 %s24, 1
        %s288 = scalar_lea.sflag [#allocation5], %s287
        %s289 = sand.u32 %s193, 1
        %s290 = smul.addr %s289, 2
        %s291 = scalar_lea.vmem [#allocation6], %s290
        %s292 = smul.u32 2, %s29
        %p293 = scmp.lt.s32.totalorder %s28, 1
        %s294 = scalar_select %p293, %s28, 1
        %p295 = scmp.lt.s32.totalorder %s292, 1
        %s296 = scalar_select %p295, %s292, 1
        %s297 = smul.addr %s294, 2
        %s298 = sadd.s32 %s296, %s297
        %s299 = smul.addr %s298, 4
        %s300 = scalar_lea.vmem %s0, %s299
        %s301 = smul.u32 2, %s29
        %s302 = smul.u32 2, %s29
        %s303 = smul.u32 2, %s29
        %s304 = smul.u32 2, %s29
        %v306 = vld [vmem:[%s300] sm:$0xff]
        %v307 = vld [vmem:[%s1] sm:$0xf]
        %v308 = vld [vmem:[%s1 + $0x4] sm:$0xf]
        %v309 = vld [vmem:[%s1 + $0x8] sm:$0xf]
        %v310 = vld [vmem:[%s1 + $0xc] sm:$0xf]
        %v311 = vld [vmem:[%s1 + $0x10] sm:$0xf]
        %v312 = vld [vmem:[%s1 + $0x14] sm:$0xf]
        %v313 = vld [vmem:[%s1 + $0x18] sm:$0xf]
        %v314 = vld [vmem:[%s1 + $0x1c] sm:$0xf]
        %v315 = vld [vmem:[%s1 + $0x20] sm:$0xf]
        %v316 = vld [vmem:[%s1 + $0x24] sm:$0xf]
        %v317 = vld [vmem:[%s1 + $0x28] sm:$0xf]
        %v318 = vld [vmem:[%s1 + $0x2c] sm:$0xf]
        %v319 = vld [vmem:[%s1 + $0x30] sm:$0xf]
        %v320 = vld [vmem:[%s1 + $0x34] sm:$0xf]
        %v321 = vld [vmem:[%s1 + $0x38] sm:$0xf]
        %v322 = vld [vmem:[%s1 + $0x3c] sm:$0xf]
        %v323 = vld [vmem:[%s1 + $0x40] sm:$0xf]
        %v324 = vld [vmem:[%s1 + $0x44] sm:$0xf]
        %v325 = vld [vmem:[%s1 + $0x48] sm:$0xf]
        %v326 = vld [vmem:[%s1 + $0x4c] sm:$0xf]
        %v327 = vld [vmem:[%s1 + $0x50] sm:$0xf]
        %v328 = vld [vmem:[%s1 + $0x54] sm:$0xf]
        %v329 = vld [vmem:[%s1 + $0x58] sm:$0xf]
        %v330 = vld [vmem:[%s1 + $0x5c] sm:$0xf]
        %v331 = vld [vmem:[%s1 + $0x60] sm:$0xf]
        %v332 = vld [vmem:[%s1 + $0x64] sm:$0xf]
        %v333 = vld [vmem:[%s1 + $0x68] sm:$0xf]
        %v334 = vld [vmem:[%s1 + $0x6c] sm:$0xf]
        %v335 = vld [vmem:[%s1 + $0x70] sm:$0xf]
        %v336 = vld [vmem:[%s1 + $0x74] sm:$0xf]
        %v337 = vld [vmem:[%s1 + $0x78] sm:$0xf]
        %v338 = vld [vmem:[%s1 + $0x7c] sm:$0xf]
        %v340 = vcombine.high %v306, %v306
        %v342 = vpack.c.bf16 %v306, %v306
        %v343 = vpack.c.bf16 %v340, %v340
        %v376 = vunpack.c.l.b16 %v307
        %v377 = vunpack.c.l.b16 %v308
        %v378 = vunpack.c.l.b16 %v309
        %v379 = vunpack.c.l.b16 %v310
        %v380 = vunpack.c.l.b16 %v311
        %v381 = vunpack.c.l.b16 %v312
        %v382 = vunpack.c.l.b16 %v313
        %v383 = vunpack.c.l.b16 %v314
        %v384 = vunpack.c.l.b16 %v315
        %v385 = vunpack.c.l.b16 %v316
        %v386 = vunpack.c.l.b16 %v317
        %v387 = vunpack.c.l.b16 %v318
        %v388 = vunpack.c.l.b16 %v319
        %v389 = vunpack.c.l.b16 %v320
        %v390 = vunpack.c.l.b16 %v321
        %v391 = vunpack.c.l.b16 %v322
        %v392 = vunpack.c.l.b16 %v323
        %v393 = vunpack.c.l.b16 %v324
        %v394 = vunpack.c.l.b16 %v325
        %v395 = vunpack.c.l.b16 %v326
        %v396 = vunpack.c.l.b16 %v327
        %v397 = vunpack.c.l.b16 %v328
        %v398 = vunpack.c.l.b16 %v329
        %v399 = vunpack.c.l.b16 %v330
        %v400 = vunpack.c.l.b16 %v331
        %v401 = vunpack.c.l.b16 %v332
        %v402 = vunpack.c.l.b16 %v333
        %v403 = vunpack.c.l.b16 %v334
        %v404 = vunpack.c.l.b16 %v335
        %v405 = vunpack.c.l.b16 %v336
        %v406 = vunpack.c.l.b16 %v337
        %v407 = vunpack.c.l.b16 %v338
        %v408 = vpack.c.b16 %v377, %v376
        %v409 = vpack.c.b16 %v379, %v378
        %v410 = vpack.c.b16 %v381, %v380
        %v411 = vpack.c.b16 %v383, %v382
        %v412 = vpack.c.b16 %v385, %v384
        %v413 = vpack.c.b16 %v387, %v386
        %v414 = vpack.c.b16 %v389, %v388
        %v415 = vpack.c.b16 %v391, %v390
        %v416 = vpack.c.b16 %v393, %v392
        %v417 = vpack.c.b16 %v395, %v394
        %v418 = vpack.c.b16 %v397, %v396
        %v419 = vpack.c.b16 %v399, %v398
        %v420 = vpack.c.b16 %v401, %v400
        %v421 = vpack.c.b16 %v403, %v402
        %v422 = vpack.c.b16 %v405, %v404
        %v423 = vpack.c.b16 %v407, %v406
        %vm424 = vcmask 31744
        %v426 = vsel %vm424, %v408, 0
        %v429 = vsel %vm424, %v409, 0
        %v432 = vsel %vm424, %v410, 0
        %v435 = vsel %vm424, %v411, 0
        %v438 = vsel %vm424, %v412, 0
        %v441 = vsel %vm424, %v413, 0
        %v444 = vsel %vm424, %v414, 0
        %v447 = vsel %vm424, %v415, 0
        %v450 = vsel %vm424, %v416, 0
        %v453 = vsel %vm424, %v417, 0
        %v456 = vsel %vm424, %v418, 0
        %v459 = vsel %vm424, %v419, 0
        %v462 = vsel %vm424, %v420, 0
        %v465 = vsel %vm424, %v421, 0
        %v468 = vsel %vm424, %v422, 0
        %v471 = vsel %vm424, %v423, 0
        %vm473 = vcmask 1041408
        %v475 = vsel %vm473, %v342, 0
        %v478 = vsel %vm473, %v343, 0
        %480 = vmatprep.subr.bf16.mxu0 0
        %481 = vmatpush1.bf16.msra.mxu0 0
        %482 = vmatprep.subr.bf16.mxu0 0
        %483 = vmatpush1.bf16.msra.mxu0 0
        %484 = vmatprep.subr.bf16.mxu0 0
        %485 = vmatpush1.bf16.msra.mxu0 0
        %486 = vmatprep.subr.bf16.mxu0 0
        %487 = vmatpush1.bf16.msra.mxu0 0
        %488 = vmatprep.subr.bf16.mxu0 0
        %489 = vmatpush1.bf16.msra.mxu0 0
        %490 = vmatprep.subr.bf16.mxu0 0
        %491 = vmatpush1.bf16.msra.mxu0 0
        %492 = vmatprep.subr.bf16.mxu0 0
        %493 = vmatpush1.bf16.msra.mxu0 0
        %494 = vmatprep.subr.bf16.mxu0 %v478
        %495 = vmatpush1.bf16.msra.mxu0 %v475
        %496 = vmatprep.subr.bf16.mxu0 0
        %497 = vmatpush2.bf16.msra.mxu0 0
        %498 = vmatprep.subr.bf16.mxu0 0
        %499 = vmatpush2.bf16.msra.mxu0 0
        %500 = vmatprep.subr.bf16.mxu0 0
        %501 = vmatpush2.bf16.msra.mxu0 0
        %502 = vmatprep.subr.bf16.mxu0 0
        %503 = vmatpush2.bf16.msra.mxu0 0
        %504 = vmatprep.subr.bf16.mxu0 0
        %505 = vmatpush2.bf16.msra.mxu0 0
        %506 = vmatprep.subr.bf16.mxu0 0
        %507 = vmatpush2.bf16.msra.mxu0 0
        %508 = vmatprep.subr.bf16.mxu0 0
        %509 = vmatpush2.bf16.msra.mxu0 0
        %510 = vmatprep.subr.bf16.mxu0 0
        %511 = vmatpush2.bf16.msra.mxu0 0
        %512 = vmatprep.mubr.bf16.mxu0 0
        %513 = vmatmul.mubr.bf16.gmra.mxu0 %v426
        %v514 = vpop.f32.mrf.mxu0
        %v515 = vadd.f32 0.0, %v514
        %v516 = vpop.f32.mrf.mxu0
        %v517 = vadd.f32 0.0, %v516
        %v518 = vpop.f32.mrf.mxu0
        %v519 = vadd.f32 0.0, %v518
        %v520 = vpop.f32.mrf.mxu0
        %v521 = vadd.f32 0.0, %v520
        %522 = vmatprep.mubr.bf16.mxu0 0
        %523 = vmatmul.mubr.bf16.gmra.mxu0 %v429
        %v524 = vpop.f32.mrf.mxu0
        %v525 = vadd.f32 0.0, %v524
        %v526 = vpop.f32.mrf.mxu0
        %v527 = vadd.f32 0.0, %v526
        %v528 = vpop.f32.mrf.mxu0
        %v529 = vadd.f32 0.0, %v528
        %v530 = vpop.f32.mrf.mxu0
        %v531 = vadd.f32 0.0, %v530
        %532 = vmatprep.mubr.bf16.mxu0 0
        %533 = vmatmul.mubr.bf16.gmra.mxu0 %v432
        %v534 = vpop.f32.mrf.mxu0
        %v535 = vadd.f32 0.0, %v534
        %v536 = vpop.f32.mrf.mxu0
        %v537 = vadd.f32 0.0, %v536
        %v538 = vpop.f32.mrf.mxu0
        %v539 = vadd.f32 0.0, %v538
        %v540 = vpop.f32.mrf.mxu0
        %v541 = vadd.f32 0.0, %v540
        %542 = vmatprep.mubr.bf16.mxu0 0
        %543 = vmatmul.mubr.bf16.gmra.mxu0 %v435
        %v544 = vpop.f32.mrf.mxu0
        %v545 = vadd.f32 0.0, %v544
        %v546 = vpop.f32.mrf.mxu0
        %v547 = vadd.f32 0.0, %v546
        %v548 = vpop.f32.mrf.mxu0
        %v549 = vadd.f32 0.0, %v548
        %v550 = vpop.f32.mrf.mxu0
        %v551 = vadd.f32 0.0, %v550
        %552 = vmatprep.mubr.bf16.mxu0 0
        %553 = vmatmul.mubr.bf16.gmra.mxu0 %v438
        %v554 = vpop.f32.mrf.mxu0
        %v555 = vadd.f32 0.0, %v554
        %v556 = vpop.f32.mrf.mxu0
        %v557 = vadd.f32 0.0, %v556
        %v558 = vpop.f32.mrf.mxu0
        %v559 = vadd.f32 0.0, %v558
        %v560 = vpop.f32.mrf.mxu0
        %v561 = vadd.f32 0.0, %v560
        %562 = vmatprep.mubr.bf16.mxu0 0
        %563 = vmatmul.mubr.bf16.gmra.mxu0 %v441
        %v564 = vpop.f32.mrf.mxu0
        %v565 = vadd.f32 0.0, %v564
        %v566 = vpop.f32.mrf.mxu0
        %v567 = vadd.f32 0.0, %v566
        %v568 = vpop.f32.mrf.mxu0
        %v569 = vadd.f32 0.0, %v568
        %v570 = vpop.f32.mrf.mxu0
        %v571 = vadd.f32 0.0, %v570
        %572 = vmatprep.mubr.bf16.mxu0 0
        %573 = vmatmul.mubr.bf16.gmra.mxu0 %v444
        %v574 = vpop.f32.mrf.mxu0
        %v575 = vadd.f32 0.0, %v574
        %v576 = vpop.f32.mrf.mxu0
        %v577 = vadd.f32 0.0, %v576
        %v578 = vpop.f32.mrf.mxu0
        %v579 = vadd.f32 0.0, %v578
        %v580 = vpop.f32.mrf.mxu0
        %v581 = vadd.f32 0.0, %v580
        %582 = vmatprep.mubr.bf16.mxu0 0
        %583 = vmatmul.mubr.bf16.gmra.mxu0 %v447
        %v584 = vpop.f32.mrf.mxu0
        %v585 = vadd.f32 0.0, %v584
        %v586 = vpop.f32.mrf.mxu0
        %v587 = vadd.f32 0.0, %v586
        %v588 = vpop.f32.mrf.mxu0
        %v589 = vadd.f32 0.0, %v588
        %v590 = vpop.f32.mrf.mxu0
        %v591 = vadd.f32 0.0, %v590
        %592 = vmatprep.mubr.bf16.mxu0 0
        %593 = vmatmul.mubr.bf16.gmra.mxu0 %v450
        %v594 = vpop.f32.mrf.mxu0
        %v595 = vadd.f32 0.0, %v594
        %v596 = vpop.f32.mrf.mxu0
        %v597 = vadd.f32 0.0, %v596
        %v598 = vpop.f32.mrf.mxu0
        %v599 = vadd.f32 0.0, %v598
        %v600 = vpop.f32.mrf.mxu0
        %v601 = vadd.f32 0.0, %v600
        %602 = vmatprep.mubr.bf16.mxu0 0
        %603 = vmatmul.mubr.bf16.gmra.mxu0 %v453
        %v604 = vpop.f32.mrf.mxu0
        %v605 = vadd.f32 0.0, %v604
        %v606 = vpop.f32.mrf.mxu0
        %v607 = vadd.f32 0.0, %v606
        %v608 = vpop.f32.mrf.mxu0
        %v609 = vadd.f32 0.0, %v608
        %v610 = vpop.f32.mrf.mxu0
        %v611 = vadd.f32 0.0, %v610
        %612 = vmatprep.mubr.bf16.mxu0 0
        %613 = vmatmul.mubr.bf16.gmra.mxu0 %v456
        %v614 = vpop.f32.mrf.mxu0
        %v615 = vadd.f32 0.0, %v614
        %v616 = vpop.f32.mrf.mxu0
        %v617 = vadd.f32 0.0, %v616
        %v618 = vpop.f32.mrf.mxu0
        %v619 = vadd.f32 0.0, %v618
        %v620 = vpop.f32.mrf.mxu0
        %v621 = vadd.f32 0.0, %v620
        %622 = vmatprep.mubr.bf16.mxu0 0
        %623 = vmatmul.mubr.bf16.gmra.mxu0 %v459
        %v624 = vpop.f32.mrf.mxu0
        %v625 = vadd.f32 0.0, %v624
        %v626 = vpop.f32.mrf.mxu0
        %v627 = vadd.f32 0.0, %v626
        %v628 = vpop.f32.mrf.mxu0
        %v629 = vadd.f32 0.0, %v628
        %v630 = vpop.f32.mrf.mxu0
        %v631 = vadd.f32 0.0, %v630
        %632 = vmatprep.mubr.bf16.mxu0 0
        %633 = vmatmul.mubr.bf16.gmra.mxu0 %v462
        %v634 = vpop.f32.mrf.mxu0
        %v635 = vadd.f32 0.0, %v634
        %v636 = vpop.f32.mrf.mxu0
        %v637 = vadd.f32 0.0, %v636
        %v638 = vpop.f32.mrf.mxu0
        %v639 = vadd.f32 0.0, %v638
        %v640 = vpop.f32.mrf.mxu0
        %v641 = vadd.f32 0.0, %v640
        %642 = vmatprep.mubr.bf16.mxu0 0
        %643 = vmatmul.mubr.bf16.gmra.mxu0 %v465
        %v644 = vpop.f32.mrf.mxu0
        %v645 = vadd.f32 0.0, %v644
        %v646 = vpop.f32.mrf.mxu0
        %v647 = vadd.f32 0.0, %v646
        %v648 = vpop.f32.mrf.mxu0
        %v649 = vadd.f32 0.0, %v648
        %v650 = vpop.f32.mrf.mxu0
        %v651 = vadd.f32 0.0, %v650
        %652 = vmatprep.mubr.bf16.mxu0 0
        %653 = vmatmul.mubr.bf16.gmra.mxu0 %v468
        %v654 = vpop.f32.mrf.mxu0
        %v655 = vadd.f32 0.0, %v654
        %v656 = vpop.f32.mrf.mxu0
        %v657 = vadd.f32 0.0, %v656
        %v658 = vpop.f32.mrf.mxu0
        %v659 = vadd.f32 0.0, %v658
        %v660 = vpop.f32.mrf.mxu0
        %v661 = vadd.f32 0.0, %v660
        %662 = vmatprep.mubr.bf16.mxu0 0
        %663 = vmatmul.mubr.bf16.gmra.mxu0 %v471
        %v664 = vpop.f32.mrf.mxu0
        %v665 = vadd.f32 0.0, %v664
        %v666 = vpop.f32.mrf.mxu0
        %v667 = vadd.f32 0.0, %v666
        %v668 = vpop.f32.mrf.mxu0
        %v669 = vadd.f32 0.0, %v668
        %v670 = vpop.f32.mrf.mxu0
        %v671 = vadd.f32 0.0, %v670
        %672 = vdwg.mxu0
        %v673 = vld [vmem:[%s3] sm:$0xff]
        %v674 = vld [vmem:[%s3 + $0x8] sm:$0xff]
        %v675 = vld [vmem:[%s3 + $0x10] sm:$0xff]
        %v676 = vld [vmem:[%s3 + $0x18] sm:$0xff]
        %v677 = vld [vmem:[%s3 + $0x20] sm:$0xff]
        %v678 = vld [vmem:[%s3 + $0x28] sm:$0xff]
        %v679 = vld [vmem:[%s3 + $0x30] sm:$0xff]
        %v680 = vld [vmem:[%s3 + $0x38] sm:$0xff]
        %v681 = vld [vmem:[%s3 + $0x40] sm:$0xff]
        %v682 = vld [vmem:[%s3 + $0x48] sm:$0xff]
        %v683 = vld [vmem:[%s3 + $0x50] sm:$0xff]
        %v684 = vld [vmem:[%s3 + $0x58] sm:$0xff]
        %v685 = vld [vmem:[%s3 + $0x60] sm:$0xff]
        %v686 = vld [vmem:[%s3 + $0x68] sm:$0xff]
        %v687 = vld [vmem:[%s3 + $0x70] sm:$0xff]
        %v688 = vld [vmem:[%s3 + $0x78] sm:$0xff]
        %v689 = vld [vmem:[%s3 + $0x80] sm:$0xff]
        %v690 = vld [vmem:[%s3 + $0x88] sm:$0xff]
        %v691 = vld [vmem:[%s3 + $0x90] sm:$0xff]
        %v692 = vld [vmem:[%s3 + $0x98] sm:$0xff]
        %v693 = vld [vmem:[%s3 + $0xa0] sm:$0xff]
        %v694 = vld [vmem:[%s3 + $0xa8] sm:$0xff]
        %v695 = vld [vmem:[%s3 + $0xb0] sm:$0xff]
        %v696 = vld [vmem:[%s3 + $0xb8] sm:$0xff]
        %v697 = vld [vmem:[%s3 + $0xc0] sm:$0xff]
        %v698 = vld [vmem:[%s3 + $0xc8] sm:$0xff]
        %v699 = vld [vmem:[%s3 + $0xd0] sm:$0xff]
        %v700 = vld [vmem:[%s3 + $0xd8] sm:$0xff]
        %v701 = vld [vmem:[%s3 + $0xe0] sm:$0xff]
        %v702 = vld [vmem:[%s3 + $0xe8] sm:$0xff]
        %v703 = vld [vmem:[%s3 + $0xf0] sm:$0xff]
        %v704 = vld [vmem:[%s3 + $0xf8] sm:$0xff]
        %706 = vset.pattern.permute.xlu0 0
        %707 = vperm.xlu0 %706, %v673
        %v708 = vpop.permute.xlu0 %707
        %711 = vset.pattern.permute.xlu0 0
        %712 = vperm.xlu0 %711, %v674
        %v713 = vpop.permute.xlu0 %712
        %716 = vset.pattern.permute.xlu0 0
        %717 = vperm.xlu0 %716, %v675
        %v718 = vpop.permute.xlu0 %717
        %721 = vset.pattern.permute.xlu0 0
        %722 = vperm.xlu0 %721, %v676
        %v723 = vpop.permute.xlu0 %722
        %726 = vset.pattern.permute.xlu0 0
        %727 = vperm.xlu0 %726, %v677
        %v728 = vpop.permute.xlu0 %727
        %731 = vset.pattern.permute.xlu0 0
        %732 = vperm.xlu0 %731, %v678
        %v733 = vpop.permute.xlu0 %732
        %736 = vset.pattern.permute.xlu0 0
        %737 = vperm.xlu0 %736, %v679
        %v738 = vpop.permute.xlu0 %737
        %741 = vset.pattern.permute.xlu0 0
        %742 = vperm.xlu0 %741, %v680
        %v743 = vpop.permute.xlu0 %742
        %746 = vset.pattern.permute.xlu0 0
        %747 = vperm.xlu0 %746, %v681
        %v748 = vpop.permute.xlu0 %747
        %751 = vset.pattern.permute.xlu0 0
        %752 = vperm.xlu0 %751, %v682
        %v753 = vpop.permute.xlu0 %752
        %756 = vset.pattern.permute.xlu0 0
        %757 = vperm.xlu0 %756, %v683
        %v758 = vpop.permute.xlu0 %757
        %761 = vset.pattern.permute.xlu0 0
        %762 = vperm.xlu0 %761, %v684
        %v763 = vpop.permute.xlu0 %762
        %766 = vset.pattern.permute.xlu0 0
        %767 = vperm.xlu0 %766, %v685
        %v768 = vpop.permute.xlu0 %767
        %771 = vset.pattern.permute.xlu0 0
        %772 = vperm.xlu0 %771, %v686
        %v773 = vpop.permute.xlu0 %772
        %776 = vset.pattern.permute.xlu0 0
        %777 = vperm.xlu0 %776, %v687
        %v778 = vpop.permute.xlu0 %777
        %781 = vset.pattern.permute.xlu0 0
        %782 = vperm.xlu0 %781, %v688
        %v783 = vpop.permute.xlu0 %782
        %786 = vset.pattern.permute.xlu0 0
        %787 = vperm.xlu0 %786, %v689
        %v788 = vpop.permute.xlu0 %787
        %791 = vset.pattern.permute.xlu0 0
        %792 = vperm.xlu0 %791, %v690
        %v793 = vpop.permute.xlu0 %792
        %796 = vset.pattern.permute.xlu0 0
        %797 = vperm.xlu0 %796, %v691
        %v798 = vpop.permute.xlu0 %797
        %801 = vset.pattern.permute.xlu0 0
        %802 = vperm.xlu0 %801, %v692
        %v803 = vpop.permute.xlu0 %802
        %806 = vset.pattern.permute.xlu0 0
        %807 = vperm.xlu0 %806, %v693
        %v808 = vpop.permute.xlu0 %807
        %811 = vset.pattern.permute.xlu0 0
        %812 = vperm.xlu0 %811, %v694
        %v813 = vpop.permute.xlu0 %812
        %816 = vset.pattern.permute.xlu0 0
        %817 = vperm.xlu0 %816, %v695
        %v818 = vpop.permute.xlu0 %817
        %821 = vset.pattern.permute.xlu0 0
        %822 = vperm.xlu0 %821, %v696
        %v823 = vpop.permute.xlu0 %822
        %826 = vset.pattern.permute.xlu0 0
        %827 = vperm.xlu0 %826, %v697
        %v828 = vpop.permute.xlu0 %827
        %831 = vset.pattern.permute.xlu0 0
        %832 = vperm.xlu0 %831, %v698
        %v833 = vpop.permute.xlu0 %832
        %836 = vset.pattern.permute.xlu0 0
        %837 = vperm.xlu0 %836, %v699
        %v838 = vpop.permute.xlu0 %837
        %841 = vset.pattern.permute.xlu0 0
        %842 = vperm.xlu0 %841, %v700
        %v843 = vpop.permute.xlu0 %842
        %846 = vset.pattern.permute.xlu0 0
        %847 = vperm.xlu0 %846, %v701
        %v848 = vpop.permute.xlu0 %847
        %851 = vset.pattern.permute.xlu0 0
        %852 = vperm.xlu0 %851, %v702
        %v853 = vpop.permute.xlu0 %852
        %856 = vset.pattern.permute.xlu0 0
        %857 = vperm.xlu0 %856, %v703
        %v858 = vpop.permute.xlu0 %857
        %861 = vset.pattern.permute.xlu0 0
        %862 = vperm.xlu0 %861, %v704
        %v863 = vpop.permute.xlu0 %862
        %v865 = vsub.f32 %v515, %v708
        %v866 = vsub.f32 %v517, %v708
        %v867 = vsub.f32 %v519, %v713
        %v868 = vsub.f32 %v521, %v713
        %v869 = vsub.f32 %v525, %v718
        %v870 = vsub.f32 %v527, %v718
        %v871 = vsub.f32 %v529, %v723
        %v872 = vsub.f32 %v531, %v723
        %v873 = vsub.f32 %v535, %v728
        %v874 = vsub.f32 %v537, %v728
        %v875 = vsub.f32 %v539, %v733
        %v876 = vsub.f32 %v541, %v733
        %v877 = vsub.f32 %v545, %v738
        %v878 = vsub.f32 %v547, %v738
        %v879 = vsub.f32 %v549, %v743
        %v880 = vsub.f32 %v551, %v743
        %v881 = vsub.f32 %v555, %v748
        %v882 = vsub.f32 %v557, %v748
        %v883 = vsub.f32 %v559, %v753
        %v884 = vsub.f32 %v561, %v753
        %v885 = vsub.f32 %v565, %v758
        %v886 = vsub.f32 %v567, %v758
        %v887 = vsub.f32 %v569, %v763
        %v888 = vsub.f32 %v571, %v763
        %v889 = vsub.f32 %v575, %v768
        %v890 = vsub.f32 %v577, %v768
        %v891 = vsub.f32 %v579, %v773
        %v892 = vsub.f32 %v581, %v773
        %v893 = vsub.f32 %v585, %v778
        %v894 = vsub.f32 %v587, %v778
        %v895 = vsub.f32 %v589, %v783
        %v896 = vsub.f32 %v591, %v783
        %v897 = vsub.f32 %v595, %v788
        %v898 = vsub.f32 %v597, %v788
        %v899 = vsub.f32 %v599, %v793
        %v900 = vsub.f32 %v601, %v793
        %v901 = vsub.f32 %v605, %v798
        %v902 = vsub.f32 %v607, %v798
        %v903 = vsub.f32 %v609, %v803
        %v904 = vsub.f32 %v611, %v803
        %v905 = vsub.f32 %v615, %v808
        %v906 = vsub.f32 %v617, %v808
        %v907 = vsub.f32 %v619, %v813
        %v908 = vsub.f32 %v621, %v813
        %v909 = vsub.f32 %v625, %v818
        %v910 = vsub.f32 %v627, %v818
        %v911 = vsub.f32 %v629, %v823
        %v912 = vsub.f32 %v631, %v823
        %v913 = vsub.f32 %v635, %v828
        %v914 = vsub.f32 %v637, %v828
        %v915 = vsub.f32 %v639, %v833
        %v916 = vsub.f32 %v641, %v833
        %v917 = vsub.f32 %v645, %v838
        %v918 = vsub.f32 %v647, %v838
        %v919 = vsub.f32 %v649, %v843
        %v920 = vsub.f32 %v651, %v843
        %v921 = vsub.f32 %v655, %v848
        %v922 = vsub.f32 %v657, %v848
        %v923 = vsub.f32 %v659, %v853
        %v924 = vsub.f32 %v661, %v853
        %v925 = vsub.f32 %v665, %v858
        %v926 = vsub.f32 %v667, %v858
        %v927 = vsub.f32 %v669, %v863
        %v928 = vsub.f32 %v671, %v863
        %v929 = vmax.f32 %v865, %v869
        %v930 = vmax.f32 %v867, %v871
        %v931 = vmax.f32 %v929, %v873
        %v932 = vmax.f32 %v930, %v875
        %v933 = vmax.f32 %v931, %v877
        %v934 = vmax.f32 %v932, %v879
        %v935 = vmax.f32 %v933, %v881
        %v936 = vmax.f32 %v934, %v883
        %v937 = vmax.f32 %v935, %v885
        %v938 = vmax.f32 %v936, %v887
        %v939 = vmax.f32 %v937, %v889
        %v940 = vmax.f32 %v938, %v891
        %v941 = vmax.f32 %v939, %v893
        %v942 = vmax.f32 %v940, %v895
        %v943 = vmax.f32 %v941, %v897
        %v944 = vmax.f32 %v942, %v899
        %v945 = vmax.f32 %v943, %v901
        %v946 = vmax.f32 %v944, %v903
        %v947 = vmax.f32 %v945, %v905
        %v948 = vmax.f32 %v946, %v907
        %v949 = vmax.f32 %v947, %v909
        %v950 = vmax.f32 %v948, %v911
        %v951 = vmax.f32 %v949, %v913
        %v952 = vmax.f32 %v950, %v915
        %v953 = vmax.f32 %v951, %v917
        %v954 = vmax.f32 %v952, %v919
        %v955 = vmax.f32 %v953, %v921
        %v956 = vmax.f32 %v954, %v923
        %v957 = vmax.f32 %v955, %v925
        %v958 = vmax.f32 %v956, %v927
        %v959 = vmax.f32 %v957, %v958
        %v960 = vrot.slane %v959, 4
        %v961 = vmax.f32 %v959, %v960
        %v962 = vrot.slane %v961, 2
        %v963 = vmax.f32 %v961, %v962
        %v964 = vrot.slane %v963, 1
        %v965 = vmax.f32 %v963, %v964
        %v966 = vmax.f32 %v866, %v870
        %v967 = vmax.f32 %v868, %v872
        %v968 = vmax.f32 %v966, %v874
        %v969 = vmax.f32 %v967, %v876
        %v970 = vmax.f32 %v968, %v878
        %v971 = vmax.f32 %v969, %v880
        %v972 = vmax.f32 %v970, %v882
        %v973 = vmax.f32 %v971, %v884
        %v974 = vmax.f32 %v972, %v886
        %v975 = vmax.f32 %v973, %v888
        %v976 = vmax.f32 %v974, %v890
        %v977 = vmax.f32 %v975, %v892
        %v978 = vmax.f32 %v976, %v894
        %v979 = vmax.f32 %v977, %v896
        %v980 = vmax.f32 %v978, %v898
        %v981 = vmax.f32 %v979, %v900
        %v982 = vmax.f32 %v980, %v902
        %v983 = vmax.f32 %v981, %v904
        %v984 = vmax.f32 %v982, %v906
        %v985 = vmax.f32 %v983, %v908
        %v986 = vmax.f32 %v984, %v910
        %v987 = vmax.f32 %v985, %v912
        %v988 = vmax.f32 %v986, %v914
        %v989 = vmax.f32 %v987, %v916
        %v990 = vmax.f32 %v988, %v918
        %v991 = vmax.f32 %v989, %v920
        %v992 = vmax.f32 %v990, %v922
        %v993 = vmax.f32 %v991, %v924
        %v994 = vmax.f32 %v992, %v926
        %v995 = vmax.f32 %v993, %v928
        %v996 = vmax.f32 %v994, %v995
        %v997 = vrot.slane %v996, 4
        %v998 = vmax.f32 %v996, %v997
        %v999 = vrot.slane %v998, 2
        %v1000 = vmax.f32 %v998, %v999
        %v1001 = vrot.slane %v1000, 1
        %v1002 = vmax.f32 %v1000, %v1001
        %v1003 = vlaneseq
        %v1004 = vshrl.u32 %v1003, 7
        %v1005 = vadd.s32 %v1004, 8
        %v1006 = vadd.s32 %v1004, 16
        %v1007 = vadd.s32 %v1004, 24
        %v1008 = vadd.s32 %v1004, 32
        %v1009 = vadd.s32 %v1004, 40
        %v1010 = vadd.s32 %v1004, 48
        %v1011 = vadd.s32 %v1004, 56
        %v1012 = vadd.s32 %v1004, 64
        %v1013 = vadd.s32 %v1004, 72
        %v1014 = vadd.s32 %v1004, 80
        %v1015 = vadd.s32 %v1004, 88
        %v1016 = vadd.s32 %v1004, 96
        %v1017 = vadd.s32 %v1004, 104
        %v1018 = vadd.s32 %v1004, 112
        %v1019 = vadd.s32 %v1004, 120
        %v1020 = vadd.s32 %v1004, 128
        %v1021 = vadd.s32 %v1004, 136
        %v1022 = vadd.s32 %v1004, 144
        %v1023 = vadd.s32 %v1004, 152
        %v1024 = vadd.s32 %v1004, 160
        %v1025 = vadd.s32 %v1004, 168
        %v1026 = vadd.s32 %v1004, 176
        %v1027 = vadd.s32 %v1004, 184
        %v1028 = vadd.s32 %v1004, 192
        %v1029 = vadd.s32 %v1004, 200
        %v1030 = vadd.s32 %v1004, 208
        %v1031 = vadd.s32 %v1004, 216
        %v1032 = vadd.s32 %v1004, 224
        %v1033 = vadd.s32 %v1004, 232
        %v1034 = vadd.s32 %v1004, 240
        %v1035 = vadd.s32 %v1004, 248
        %vm1036 = vcmp.eq.f32.partialorder %v865, %v965
        %vm1037 = vcmp.eq.f32.partialorder %v866, %v1002
        %vm1038 = vcmp.eq.f32.partialorder %v867, %v965
        %vm1039 = vcmp.eq.f32.partialorder %v868, %v1002
        %vm1040 = vcmp.eq.f32.partialorder %v869, %v965
        %vm1041 = vcmp.eq.f32.partialorder %v870, %v1002
        %vm1042 = vcmp.eq.f32.partialorder %v871, %v965
        %vm1043 = vcmp.eq.f32.partialorder %v872, %v1002
        %vm1044 = vcmp.eq.f32.partialorder %v873, %v965
        %vm1045 = vcmp.eq.f32.partialorder %v874, %v1002
        %vm1046 = vcmp.eq.f32.partialorder %v875, %v965
        %vm1047 = vcmp.eq.f32.partialorder %v876, %v1002
        %vm1048 = vcmp.eq.f32.partialorder %v877, %v965
        %vm1049 = vcmp.eq.f32.partialorder %v878, %v1002
        %vm1050 = vcmp.eq.f32.partialorder %v879, %v965
        %vm1051 = vcmp.eq.f32.partialorder %v880, %v1002
        %vm1052 = vcmp.eq.f32.partialorder %v881, %v965
        %vm1053 = vcmp.eq.f32.partialorder %v882, %v1002
        %vm1054 = vcmp.eq.f32.partialorder %v883, %v965
        %vm1055 = vcmp.eq.f32.partialorder %v884, %v1002
        %vm1056 = vcmp.eq.f32.partialorder %v885, %v965
        %vm1057 = vcmp.eq.f32.partialorder %v886, %v1002
        %vm1058 = vcmp.eq.f32.partialorder %v887, %v965
        %vm1059 = vcmp.eq.f32.partialorder %v888, %v1002
        %vm1060 = vcmp.eq.f32.partialorder %v889, %v965
        %vm1061 = vcmp.eq.f32.partialorder %v890, %v1002
        %vm1062 = vcmp.eq.f32.partialorder %v891, %v965
        %vm1063 = vcmp.eq.f32.partialorder %v892, %v1002
        %vm1064 = vcmp.eq.f32.partialorder %v893, %v965
        %vm1065 = vcmp.eq.f32.partialorder %v894, %v1002
        %vm1066 = vcmp.eq.f32.partialorder %v895, %v965
        %vm1067 = vcmp.eq.f32.partialorder %v896, %v1002
        %vm1068 = vcmp.eq.f32.partialorder %v897, %v965
        %vm1069 = vcmp.eq.f32.partialorder %v898, %v1002
        %vm1070 = vcmp.eq.f32.partialorder %v899, %v965
        %vm1071 = vcmp.eq.f32.partialorder %v900, %v1002
        %vm1072 = vcmp.eq.f32.partialorder %v901, %v965
        %vm1073 = vcmp.eq.f32.partialorder %v902, %v1002
        %vm1074 = vcmp.eq.f32.partialorder %v903, %v965
        %vm1075 = vcmp.eq.f32.partialorder %v904, %v1002
        %vm1076 = vcmp.eq.f32.partialorder %v905, %v965
        %vm1077 = vcmp.eq.f32.partialorder %v906, %v1002
        %vm1078 = vcmp.eq.f32.partialorder %v907, %v965
        %vm1079 = vcmp.eq.f32.partialorder %v908, %v1002
        %vm1080 = vcmp.eq.f32.partialorder %v909, %v965
        %vm1081 = vcmp.eq.f32.partialorder %v910, %v1002
        %vm1082 = vcmp.eq.f32.partialorder %v911, %v965
        %vm1083 = vcmp.eq.f32.partialorder %v912, %v1002
        %vm1084 = vcmp.eq.f32.partialorder %v913, %v965
        %vm1085 = vcmp.eq.f32.partialorder %v914, %v1002
        %vm1086 = vcmp.eq.f32.partialorder %v915, %v965
        %vm1087 = vcmp.eq.f32.partialorder %v916, %v1002
        %vm1088 = vcmp.eq.f32.partialorder %v917, %v965
        %vm1089 = vcmp.eq.f32.partialorder %v918, %v1002
        %vm1090 = vcmp.eq.f32.partialorder %v919, %v965
        %vm1091 = vcmp.eq.f32.partialorder %v920, %v1002
        %vm1092 = vcmp.eq.f32.partialorder %v921, %v965
        %vm1093 = vcmp.eq.f32.partialorder %v922, %v1002
        %vm1094 = vcmp.eq.f32.partialorder %v923, %v965
        %vm1095 = vcmp.eq.f32.partialorder %v924, %v1002
        %vm1096 = vcmp.eq.f32.partialorder %v925, %v965
        %vm1097 = vcmp.eq.f32.partialorder %v926, %v1002
        %vm1098 = vcmp.eq.f32.partialorder %v927, %v965
        %vm1099 = vcmp.eq.f32.partialorder %v928, %v1002
        %v1100 = vsel %vm1036, %v1004, 256
        %v1101 = vsel %vm1037, %v1004, 256
        %v1102 = vsel %vm1038, %v1005, 256
        %v1103 = vsel %vm1039, %v1005, 256
        %v1104 = vsel %vm1040, %v1006, 256
        %v1105 = vsel %vm1041, %v1006, 256
        %v1106 = vsel %vm1042, %v1007, 256
        %v1107 = vsel %vm1043, %v1007, 256
        %v1108 = vsel %vm1044, %v1008, 256
        %v1109 = vsel %vm1045, %v1008, 256
        %v1110 = vsel %vm1046, %v1009, 256
        %v1111 = vsel %vm1047, %v1009, 256
        %v1112 = vsel %vm1048, %v1010, 256
        %v1113 = vsel %vm1049, %v1010, 256
        %v1114 = vsel %vm1050, %v1011, 256
        %v1115 = vsel %vm1051, %v1011, 256
        %v1116 = vsel %vm1052, %v1012, 256
        %v1117 = vsel %vm1053, %v1012, 256
        %v1118 = vsel %vm1054, %v1013, 256
        %v1119 = vsel %vm1055, %v1013, 256
        %v1120 = vsel %vm1056, %v1014, 256
        %v1121 = vsel %vm1057, %v1014, 256
        %v1122 = vsel %vm1058, %v1015, 256
        %v1123 = vsel %vm1059, %v1015, 256
        %v1124 = vsel %vm1060, %v1016, 256
        %v1125 = vsel %vm1061, %v1016, 256
        %v1126 = vsel %vm1062, %v1017, 256
        %v1127 = vsel %vm1063, %v1017, 256
        %v1128 = vsel %vm1064, %v1018, 256
        %v1129 = vsel %vm1065, %v1018, 256
        %v1130 = vsel %vm1066, %v1019, 256
        %v1131 = vsel %vm1067, %v1019, 256
        %v1132 = vsel %vm1068, %v1020, 256
        %v1133 = vsel %vm1069, %v1020, 256
        %v1134 = vsel %vm1070, %v1021, 256
        %v1135 = vsel %vm1071, %v1021, 256
        %v1136 = vsel %vm1072, %v1022, 256
        %v1137 = vsel %vm1073, %v1022, 256
        %v1138 = vsel %vm1074, %v1023, 256
        %v1139 = vsel %vm1075, %v1023, 256
        %v1140 = vsel %vm1076, %v1024, 256
        %v1141 = vsel %vm1077, %v1024, 256
        %v1142 = vsel %vm1078, %v1025, 256
        %v1143 = vsel %vm1079, %v1025, 256
        %v1144 = vsel %vm1080, %v1026, 256
        %v1145 = vsel %vm1081, %v1026, 256
        %v1146 = vsel %vm1082, %v1027, 256
        %v1147 = vsel %vm1083, %v1027, 256
        %v1148 = vsel %vm1084, %v1028, 256
        %v1149 = vsel %vm1085, %v1028, 256
        %v1150 = vsel %vm1086, %v1029, 256
        %v1151 = vsel %vm1087, %v1029, 256
        %v1152 = vsel %vm1088, %v1030, 256
        %v1153 = vsel %vm1089, %v1030, 256
        %v1154 = vsel %vm1090, %v1031, 256
        %v1155 = vsel %vm1091, %v1031, 256
        %v1156 = vsel %vm1092, %v1032, 256
        %v1157 = vsel %vm1093, %v1032, 256
        %v1158 = vsel %vm1094, %v1033, 256
        %v1159 = vsel %vm1095, %v1033, 256
        %v1160 = vsel %vm1096, %v1034, 256
        %v1161 = vsel %vm1097, %v1034, 256
        %v1162 = vsel %vm1098, %v1035, 256
        %v1163 = vsel %vm1099, %v1035, 256
        %vm1164 = vcmp.lt.s32.totalorder %v1100, %v1104
        %v1165 = vsel %vm1164, %v1100, %v1104
        %vm1166 = vcmp.lt.s32.totalorder %v1102, %v1106
        %v1167 = vsel %vm1166, %v1102, %v1106
        %vm1168 = vcmp.lt.s32.totalorder %v1165, %v1108
        %v1169 = vsel %vm1168, %v1165, %v1108
        %vm1170 = vcmp.lt.s32.totalorder %v1167, %v1110
        %v1171 = vsel %vm1170, %v1167, %v1110
        %vm1172 = vcmp.lt.s32.totalorder %v1169, %v1112
        %v1173 = vsel %vm1172, %v1169, %v1112
        %vm1174 = vcmp.lt.s32.totalorder %v1171, %v1114
        %v1175 = vsel %vm1174, %v1171, %v1114
        %vm1176 = vcmp.lt.s32.totalorder %v1173, %v1116
        %v1177 = vsel %vm1176, %v1173, %v1116
        %vm1178 = vcmp.lt.s32.totalorder %v1175, %v1118
        %v1179 = vsel %vm1178, %v1175, %v1118
        %vm1180 = vcmp.lt.s32.totalorder %v1177, %v1120
        %v1181 = vsel %vm1180, %v1177, %v1120
        %vm1182 = vcmp.lt.s32.totalorder %v1179, %v1122
        %v1183 = vsel %vm1182, %v1179, %v1122
        %vm1184 = vcmp.lt.s32.totalorder %v1181, %v1124
        %v1185 = vsel %vm1184, %v1181, %v1124
        %vm1186 = vcmp.lt.s32.totalorder %v1183, %v1126
        %v1187 = vsel %vm1186, %v1183, %v1126
        %vm1188 = vcmp.lt.s32.totalorder %v1185, %v1128
        %v1189 = vsel %vm1188, %v1185, %v1128
        %vm1190 = vcmp.lt.s32.totalorder %v1187, %v1130
        %v1191 = vsel %vm1190, %v1187, %v1130
        %vm1192 = vcmp.lt.s32.totalorder %v1189, %v1132
        %v1193 = vsel %vm1192, %v1189, %v1132
        %vm1194 = vcmp.lt.s32.totalorder %v1191, %v1134
        %v1195 = vsel %vm1194, %v1191, %v1134
        %vm1196 = vcmp.lt.s32.totalorder %v1193, %v1136
        %v1197 = vsel %vm1196, %v1193, %v1136
        %vm1198 = vcmp.lt.s32.totalorder %v1195, %v1138
        %v1199 = vsel %vm1198, %v1195, %v1138
        %vm1200 = vcmp.lt.s32.totalorder %v1197, %v1140
        %v1201 = vsel %vm1200, %v1197, %v1140
        %vm1202 = vcmp.lt.s32.totalorder %v1199, %v1142
        %v1203 = vsel %vm1202, %v1199, %v1142
        %vm1204 = vcmp.lt.s32.totalorder %v1201, %v1144
        %v1205 = vsel %vm1204, %v1201, %v1144
        %vm1206 = vcmp.lt.s32.totalorder %v1203, %v1146
        %v1207 = vsel %vm1206, %v1203, %v1146
        %vm1208 = vcmp.lt.s32.totalorder %v1205, %v1148
        %v1209 = vsel %vm1208, %v1205, %v1148
        %vm1210 = vcmp.lt.s32.totalorder %v1207, %v1150
        %v1211 = vsel %vm1210, %v1207, %v1150
        %vm1212 = vcmp.lt.s32.totalorder %v1209, %v1152
        %v1213 = vsel %vm1212, %v1209, %v1152
        %vm1214 = vcmp.lt.s32.totalorder %v1211, %v1154
        %v1215 = vsel %vm1214, %v1211, %v1154
        %vm1216 = vcmp.lt.s32.totalorder %v1213, %v1156
        %v1217 = vsel %vm1216, %v1213, %v1156
        %vm1218 = vcmp.lt.s32.totalorder %v1215, %v1158
        %v1219 = vsel %vm1218, %v1215, %v1158
        %vm1220 = vcmp.lt.s32.totalorder %v1217, %v1160
        %v1221 = vsel %vm1220, %v1217, %v1160
        %vm1222 = vcmp.lt.s32.totalorder %v1219, %v1162
        %v1223 = vsel %vm1222, %v1219, %v1162
        %vm1224 = vcmp.lt.s32.totalorder %v1221, %v1223
        %v1225 = vsel %vm1224, %v1221, %v1223
        %v1226 = vrot.slane %v1225, 4
        %vm1227 = vcmp.lt.s32.totalorder %v1225, %v1226
        %v1228 = vsel %vm1227, %v1225, %v1226
        %v1229 = vrot.slane %v1228, 2
        %vm1230 = vcmp.lt.s32.totalorder %v1228, %v1229
        %v1231 = vsel %vm1230, %v1228, %v1229
        %v1232 = vrot.slane %v1231, 1
        %vm1233 = vcmp.lt.s32.totalorder %v1231, %v1232
        %v1234 = vsel %vm1233, %v1231, %v1232
        %vm1235 = vcmp.lt.s32.totalorder %v1101, %v1105
        %v1236 = vsel %vm1235, %v1101, %v1105
        %vm1237 = vcmp.lt.s32.totalorder %v1103, %v1107
        %v1238 = vsel %vm1237, %v1103, %v1107
        %vm1239 = vcmp.lt.s32.totalorder %v1236, %v1109
        %v1240 = vsel %vm1239, %v1236, %v1109
        %vm1241 = vcmp.lt.s32.totalorder %v1238, %v1111
        %v1242 = vsel %vm1241, %v1238, %v1111
        %vm1243 = vcmp.lt.s32.totalorder %v1240, %v1113
        %v1244 = vsel %vm1243, %v1240, %v1113
        %vm1245 = vcmp.lt.s32.totalorder %v1242, %v1115
        %v1246 = vsel %vm1245, %v1242, %v1115
        %vm1247 = vcmp.lt.s32.totalorder %v1244, %v1117
        %v1248 = vsel %vm1247, %v1244, %v1117
        %vm1249 = vcmp.lt.s32.totalorder %v1246, %v1119
        %v1250 = vsel %vm1249, %v1246, %v1119
        %vm1251 = vcmp.lt.s32.totalorder %v1248, %v1121
        %v1252 = vsel %vm1251, %v1248, %v1121
        %vm1253 = vcmp.lt.s32.totalorder %v1250, %v1123
        %v1254 = vsel %vm1253, %v1250, %v1123
        %vm1255 = vcmp.lt.s32.totalorder %v1252, %v1125
        %v1256 = vsel %vm1255, %v1252, %v1125
        %vm1257 = vcmp.lt.s32.totalorder %v1254, %v1127
        %v1258 = vsel %vm1257, %v1254, %v1127
        %vm1259 = vcmp.lt.s32.totalorder %v1256, %v1129
        %v1260 = vsel %vm1259, %v1256, %v1129
        %vm1261 = vcmp.lt.s32.totalorder %v1258, %v1131
        %v1262 = vsel %vm1261, %v1258, %v1131
        %vm1263 = vcmp.lt.s32.totalorder %v1260, %v1133
        %v1264 = vsel %vm1263, %v1260, %v1133
        %vm1265 = vcmp.lt.s32.totalorder %v1262, %v1135
        %v1266 = vsel %vm1265, %v1262, %v1135
        %vm1267 = vcmp.lt.s32.totalorder %v1264, %v1137
        %v1268 = vsel %vm1267, %v1264, %v1137
        %vm1269 = vcmp.lt.s32.totalorder %v1266, %v1139
        %v1270 = vsel %vm1269, %v1266, %v1139
        %vm1271 = vcmp.lt.s32.totalorder %v1268, %v1141
        %v1272 = vsel %vm1271, %v1268, %v1141
        %vm1273 = vcmp.lt.s32.totalorder %v1270, %v1143
        %v1274 = vsel %vm1273, %v1270, %v1143
        %vm1275 = vcmp.lt.s32.totalorder %v1272, %v1145
        %v1276 = vsel %vm1275, %v1272, %v1145
        %vm1277 = vcmp.lt.s32.totalorder %v1274, %v1147
        %v1278 = vsel %vm1277, %v1274, %v1147
        %vm1279 = vcmp.lt.s32.totalorder %v1276, %v1149
        %v1280 = vsel %vm1279, %v1276, %v1149
        %vm1281 = vcmp.lt.s32.totalorder %v1278, %v1151
        %v1282 = vsel %vm1281, %v1278, %v1151
        %vm1283 = vcmp.lt.s32.totalorder %v1280, %v1153
        %v1284 = vsel %vm1283, %v1280, %v1153
        %vm1285 = vcmp.lt.s32.totalorder %v1282, %v1155
        %v1286 = vsel %vm1285, %v1282, %v1155
        %vm1287 = vcmp.lt.s32.totalorder %v1284, %v1157
        %v1288 = vsel %vm1287, %v1284, %v1157
        %vm1289 = vcmp.lt.s32.totalorder %v1286, %v1159
        %v1290 = vsel %vm1289, %v1286, %v1159
        %vm1291 = vcmp.lt.s32.totalorder %v1288, %v1161
        %v1292 = vsel %vm1291, %v1288, %v1161
        %vm1293 = vcmp.lt.s32.totalorder %v1290, %v1163
        %v1294 = vsel %vm1293, %v1290, %v1163
        %vm1295 = vcmp.lt.s32.totalorder %v1292, %v1294
        %v1296 = vsel %vm1295, %v1292, %v1294
        %v1297 = vrot.slane %v1296, 4
        %vm1298 = vcmp.lt.s32.totalorder %v1296, %v1297
        %v1299 = vsel %vm1298, %v1296, %v1297
        %v1300 = vrot.slane %v1299, 2
        %vm1301 = vcmp.lt.s32.totalorder %v1299, %v1300
        %v1302 = vsel %vm1301, %v1299, %v1300
        %v1303 = vrot.slane %v1302, 1
        %vm1304 = vcmp.lt.s32.totalorder %v1302, %v1303
        %v1305 = vsel %vm1304, %v1302, %v1303
        %v1306 = vcombine.low %v1234, %v1305
        %v1308 = vunpack.c.l.s4 1966171168
        %v1309 = vunpack.c.0.s8 %v1308
        %v1310 = vlaneseq
        %v1311 = vshrl.u32 %v1310, 7
        %v1312 = vsub.s32 %v1309, %v1311
        %v1313 = vrot.slane %v1306, %v1312
        %v1315 = vunpack.c.l.s4 1966171168
        %v1316 = vunpack.c.0.s8 %v1315
        %v1317 = vlaneseq
        %v1318 = vshrl.u32 %v1317, 7
        %v1319 = vsub.s32 %v1316, %v1318
        %v1320 = vrot.slane %v1313, %v1319
        %v1321 = vlaneseq
        %vm1322 = vcmp.ge.s32.totalorder %v1321, 0
        %vm1323 = vcmp.lt.s32.totalorder %v1321, 256
        %vm1324 = vmand %vm1322, %vm1323
        %1325 = vst.msk [vmem:[%s284] sm:$0x3] %vm1324, %v1320
        %vm1326 = vcmp.eq.s32.totalorder %v1004, %v1234
        %vm1327 = vcmp.eq.s32.totalorder %v1004, %v1305
        %vm1328 = vcmp.eq.s32.totalorder %v1005, %v1234
        %vm1329 = vcmp.eq.s32.totalorder %v1005, %v1305
        %vm1330 = vcmp.eq.s32.totalorder %v1006, %v1234
        %vm1331 = vcmp.eq.s32.totalorder %v1006, %v1305
        %vm1332 = vcmp.eq.s32.totalorder %v1007, %v1234
        %vm1333 = vcmp.eq.s32.totalorder %v1007, %v1305
        %vm1334 = vcmp.eq.s32.totalorder %v1008, %v1234
        %vm1335 = vcmp.eq.s32.totalorder %v1008, %v1305
        %vm1336 = vcmp.eq.s32.totalorder %v1009, %v1234
        %vm1337 = vcmp.eq.s32.totalorder %v1009, %v1305
        %vm1338 = vcmp.eq.s32.totalorder %v1010, %v1234
        %vm1339 = vcmp.eq.s32.totalorder %v1010, %v1305
        %vm1340 = vcmp.eq.s32.totalorder %v1011, %v1234
        %vm1341 = vcmp.eq.s32.totalorder %v1011, %v1305
        %vm1342 = vcmp.eq.s32.totalorder %v1012, %v1234
        %vm1343 = vcmp.eq.s32.totalorder %v1012, %v1305
        %vm1344 = vcmp.eq.s32.totalorder %v1013, %v1234
        %vm1345 = vcmp.eq.s32.totalorder %v1013, %v1305
        %vm1346 = vcmp.eq.s32.totalorder %v1014, %v1234
        %vm1347 = vcmp.eq.s32.totalorder %v1014, %v1305
        %vm1348 = vcmp.eq.s32.totalorder %v1015, %v1234
        %vm1349 = vcmp.eq.s32.totalorder %v1015, %v1305
        %vm1350 = vcmp.eq.s32.totalorder %v1016, %v1234
        %vm1351 = vcmp.eq.s32.totalorder %v1016, %v1305
        %vm1352 = vcmp.eq.s32.totalorder %v1017, %v1234
        %vm1353 = vcmp.eq.s32.totalorder %v1017, %v1305
        %vm1354 = vcmp.eq.s32.totalorder %v1018, %v1234
        %vm1355 = vcmp.eq.s32.totalorder %v1018, %v1305
        %vm1356 = vcmp.eq.s32.totalorder %v1019, %v1234
        %vm1357 = vcmp.eq.s32.totalorder %v1019, %v1305
        %vm1358 = vcmp.eq.s32.totalorder %v1020, %v1234
        %vm1359 = vcmp.eq.s32.totalorder %v1020, %v1305
        %vm1360 = vcmp.eq.s32.totalorder %v1021, %v1234
        %vm1361 = vcmp.eq.s32.totalorder %v1021, %v1305
        %vm1362 = vcmp.eq.s32.totalorder %v1022, %v1234
        %vm1363 = vcmp.eq.s32.totalorder %v1022, %v1305
        %vm1364 = vcmp.eq.s32.totalorder %v1023, %v1234
        %vm1365 = vcmp.eq.s32.totalorder %v1023, %v1305
        %vm1366 = vcmp.eq.s32.totalorder %v1024, %v1234
        %vm1367 = vcmp.eq.s32.totalorder %v1024, %v1305
        %vm1368 = vcmp.eq.s32.totalorder %v1025, %v1234
        %vm1369 = vcmp.eq.s32.totalorder %v1025, %v1305
        %vm1370 = vcmp.eq.s32.totalorder %v1026, %v1234
        %vm1371 = vcmp.eq.s32.totalorder %v1026, %v1305
        %vm1372 = vcmp.eq.s32.totalorder %v1027, %v1234
        %vm1373 = vcmp.eq.s32.totalorder %v1027, %v1305
        %vm1374 = vcmp.eq.s32.totalorder %v1028, %v1234
        %vm1375 = vcmp.eq.s32.totalorder %v1028, %v1305
        %vm1376 = vcmp.eq.s32.totalorder %v1029, %v1234
        %vm1377 = vcmp.eq.s32.totalorder %v1029, %v1305
        %vm1378 = vcmp.eq.s32.totalorder %v1030, %v1234
        %vm1379 = vcmp.eq.s32.totalorder %v1030, %v1305
        %vm1380 = vcmp.eq.s32.totalorder %v1031, %v1234
        %vm1381 = vcmp.eq.s32.totalorder %v1031, %v1305
        %vm1382 = vcmp.eq.s32.totalorder %v1032, %v1234
        %vm1383 = vcmp.eq.s32.totalorder %v1032, %v1305
        %vm1384 = vcmp.eq.s32.totalorder %v1033, %v1234
        %vm1385 = vcmp.eq.s32.totalorder %v1033, %v1305
        %vm1386 = vcmp.eq.s32.totalorder %v1034, %v1234
        %vm1387 = vcmp.eq.s32.totalorder %v1034, %v1305
        %vm1388 = vcmp.eq.s32.totalorder %v1035, %v1234
        %vm1389 = vcmp.eq.s32.totalorder %v1035, %v1305
        %v1390 = vsel %vm1326, 1, 0
        %v1391 = vsel %vm1327, 1, 0
        %v1392 = vsel %vm1328, 1, 0
        %v1393 = vsel %vm1329, 1, 0
        %v1394 = vsel %vm1330, 1, 0
        %v1395 = vsel %vm1331, 1, 0
        %v1396 = vsel %vm1332, 1, 0
        %v1397 = vsel %vm1333, 1, 0
        %v1398 = vsel %vm1334, 1, 0
        %v1399 = vsel %vm1335, 1, 0
        %v1400 = vsel %vm1336, 1, 0
        %v1401 = vsel %vm1337, 1, 0
        %v1402 = vsel %vm1338, 1, 0
        %v1403 = vsel %vm1339, 1, 0
        %v1404 = vsel %vm1340, 1, 0
        %v1405 = vsel %vm1341, 1, 0
        %v1406 = vsel %vm1342, 1, 0
        %v1407 = vsel %vm1343, 1, 0
        %v1408 = vsel %vm1344, 1, 0
        %v1409 = vsel %vm1345, 1, 0
        %v1410 = vsel %vm1346, 1, 0
        %v1411 = vsel %vm1347, 1, 0
        %v1412 = vsel %vm1348, 1, 0
        %v1413 = vsel %vm1349, 1, 0
        %v1414 = vsel %vm1350, 1, 0
        %v1415 = vsel %vm1351, 1, 0
        %v1416 = vsel %vm1352, 1, 0
        %v1417 = vsel %vm1353, 1, 0
        %v1418 = vsel %vm1354, 1, 0
        %v1419 = vsel %vm1355, 1, 0
        %v1420 = vsel %vm1356, 1, 0
        %v1421 = vsel %vm1357, 1, 0
        %v1422 = vsel %vm1358, 1, 0
        %v1423 = vsel %vm1359, 1, 0
        %v1424 = vsel %vm1360, 1, 0
        %v1425 = vsel %vm1361, 1, 0
        %v1426 = vsel %vm1362, 1, 0
        %v1427 = vsel %vm1363, 1, 0
        %v1428 = vsel %vm1364, 1, 0
        %v1429 = vsel %vm1365, 1, 0
        %v1430 = vsel %vm1366, 1, 0
        %v1431 = vsel %vm1367, 1, 0
        %v1432 = vsel %vm1368, 1, 0
        %v1433 = vsel %vm1369, 1, 0
        %v1434 = vsel %vm1370, 1, 0
        %v1435 = vsel %vm1371, 1, 0
        %v1436 = vsel %vm1372, 1, 0
        %v1437 = vsel %vm1373, 1, 0
        %v1438 = vsel %vm1374, 1, 0
        %v1439 = vsel %vm1375, 1, 0
        %v1440 = vsel %vm1376, 1, 0
        %v1441 = vsel %vm1377, 1, 0
        %v1442 = vsel %vm1378, 1, 0
        %v1443 = vsel %vm1379, 1, 0
        %v1444 = vsel %vm1380, 1, 0
        %v1445 = vsel %vm1381, 1, 0
        %v1446 = vsel %vm1382, 1, 0
        %v1447 = vsel %vm1383, 1, 0
        %v1448 = vsel %vm1384, 1, 0
        %v1449 = vsel %vm1385, 1, 0
        %v1450 = vsel %vm1386, 1, 0
        %v1451 = vsel %vm1387, 1, 0
        %v1452 = vsel %vm1388, 1, 0
        %v1453 = vsel %vm1389, 1, 0
        %v1454 = vcvt.s32.f32 %v1390
        %v1455 = vcvt.s32.f32 %v1391
        %v1456 = vcvt.s32.f32 %v1392
        %v1457 = vcvt.s32.f32 %v1393
        %v1458 = vcvt.s32.f32 %v1394
        %v1459 = vcvt.s32.f32 %v1395
        %v1460 = vcvt.s32.f32 %v1396
        %v1461 = vcvt.s32.f32 %v1397
        %v1462 = vcvt.s32.f32 %v1398
        %v1463 = vcvt.s32.f32 %v1399
        %v1464 = vcvt.s32.f32 %v1400
        %v1465 = vcvt.s32.f32 %v1401
        %v1466 = vcvt.s32.f32 %v1402
        %v1467 = vcvt.s32.f32 %v1403
        %v1468 = vcvt.s32.f32 %v1404
        %v1469 = vcvt.s32.f32 %v1405
        %v1470 = vcvt.s32.f32 %v1406
        %v1471 = vcvt.s32.f32 %v1407
        %v1472 = vcvt.s32.f32 %v1408
        %v1473 = vcvt.s32.f32 %v1409
        %v1474 = vcvt.s32.f32 %v1410
        %v1475 = vcvt.s32.f32 %v1411
        %v1476 = vcvt.s32.f32 %v1412
        %v1477 = vcvt.s32.f32 %v1413
        %v1478 = vcvt.s32.f32 %v1414
        %v1479 = vcvt.s32.f32 %v1415
        %v1480 = vcvt.s32.f32 %v1416
        %v1481 = vcvt.s32.f32 %v1417
        %v1482 = vcvt.s32.f32 %v1418
        %v1483 = vcvt.s32.f32 %v1419
        %v1484 = vcvt.s32.f32 %v1420
        %v1485 = vcvt.s32.f32 %v1421
        %v1486 = vcvt.s32.f32 %v1422
        %v1487 = vcvt.s32.f32 %v1423
        %v1488 = vcvt.s32.f32 %v1424
        %v1489 = vcvt.s32.f32 %v1425
        %v1490 = vcvt.s32.f32 %v1426
        %v1491 = vcvt.s32.f32 %v1427
        %v1492 = vcvt.s32.f32 %v1428
        %v1493 = vcvt.s32.f32 %v1429
        %v1494 = vcvt.s32.f32 %v1430
        %v1495 = vcvt.s32.f32 %v1431
        %v1496 = vcvt.s32.f32 %v1432
        %v1497 = vcvt.s32.f32 %v1433
        %v1498 = vcvt.s32.f32 %v1434
        %v1499 = vcvt.s32.f32 %v1435
        %v1500 = vcvt.s32.f32 %v1436
        %v1501 = vcvt.s32.f32 %v1437
        %v1502 = vcvt.s32.f32 %v1438
        %v1503 = vcvt.s32.f32 %v1439
        %v1504 = vcvt.s32.f32 %v1440
        %v1505 = vcvt.s32.f32 %v1441
        %v1506 = vcvt.s32.f32 %v1442
        %v1507 = vcvt.s32.f32 %v1443
        %v1508 = vcvt.s32.f32 %v1444
        %v1509 = vcvt.s32.f32 %v1445
        %v1510 = vcvt.s32.f32 %v1446
        %v1511 = vcvt.s32.f32 %v1447
        %v1512 = vcvt.s32.f32 %v1448
        %v1513 = vcvt.s32.f32 %v1449
        %v1514 = vcvt.s32.f32 %v1450
        %v1515 = vcvt.s32.f32 %v1451
        %v1516 = vcvt.s32.f32 %v1452
        %v1517 = vcvt.s32.f32 %v1453
        %v1518 = vld [vmem:[%s2] sm:$0xff]
        %v1520 = vcombine.high %v1518, %v1518
        %1522 = vmatprep.subr.mxu0 %v1485
        %1523 = vmatpush1.msra.mxu0 %v1484
        %1524 = vmatprep.subr.mxu0 %v1483
        %1525 = vmatpush1.msra.mxu0 %v1482
        %1526 = vmatprep.subr.mxu0 %v1481
        %1527 = vmatpush1.msra.mxu0 %v1480
        %1528 = vmatprep.subr.mxu0 %v1479
        %1529 = vmatpush1.msra.mxu0 %v1478
        %1530 = vmatprep.subr.mxu0 %v1477
        %1531 = vmatpush1.msra.mxu0 %v1476
        %1532 = vmatprep.subr.mxu0 %v1475
        %1533 = vmatpush1.msra.mxu0 %v1474
        %1534 = vmatprep.subr.mxu0 %v1473
        %1535 = vmatpush1.msra.mxu0 %v1472
        %1536 = vmatprep.subr.mxu0 %v1471
        %1537 = vmatpush1.msra.mxu0 %v1470
        %1538 = vmatprep.subr.mxu0 %v1469
        %1539 = vmatpush1.msra.mxu0 %v1468
        %1540 = vmatprep.subr.mxu0 %v1467
        %1541 = vmatpush1.msra.mxu0 %v1466
        %1542 = vmatprep.subr.mxu0 %v1465
        %1543 = vmatpush1.msra.mxu0 %v1464
        %1544 = vmatprep.subr.mxu0 %v1463
        %1545 = vmatpush1.msra.mxu0 %v1462
        %1546 = vmatprep.subr.mxu0 %v1461
        %1547 = vmatpush1.msra.mxu0 %v1460
        %1548 = vmatprep.subr.mxu0 %v1459
        %1549 = vmatpush1.msra.mxu0 %v1458
        %1550 = vmatprep.subr.mxu0 %v1457
        %1551 = vmatpush1.msra.mxu0 %v1456
        %1552 = vmatprep.subr.mxu0 %v1455
        %1553 = vmatpush1.msra.mxu0 %v1454
        %1554 = vmatprep.subr.mxu0 %v1517
        %1555 = vmatpush2.msra.mxu0 %v1516
        %1556 = vmatprep.subr.mxu0 %v1515
        %1557 = vmatpush2.msra.mxu0 %v1514
        %1558 = vmatprep.subr.mxu0 %v1513
        %1559 = vmatpush2.msra.mxu0 %v1512
        %1560 = vmatprep.subr.mxu0 %v1511
        %1561 = vmatpush2.msra.mxu0 %v1510
        %1562 = vmatprep.subr.mxu0 %v1509
        %1563 = vmatpush2.msra.mxu0 %v1508
        %1564 = vmatprep.subr.mxu0 %v1507
        %1565 = vmatpush2.msra.mxu0 %v1506
        %1566 = vmatprep.subr.mxu0 %v1505
        %1567 = vmatpush2.msra.mxu0 %v1504
        %1568 = vmatprep.subr.mxu0 %v1503
        %1569 = vmatpush2.msra.mxu0 %v1502
        %1570 = vmatprep.subr.mxu0 %v1501
        %1571 = vmatpush2.msra.mxu0 %v1500
        %1572 = vmatprep.subr.mxu0 %v1499
        %1573 = vmatpush2.msra.mxu0 %v1498
        %1574 = vmatprep.subr.mxu0 %v1497
        %1575 = vmatpush2.msra.mxu0 %v1496
        %1576 = vmatprep.subr.mxu0 %v1495
        %1577 = vmatpush2.msra.mxu0 %v1494
        %1578 = vmatprep.subr.mxu0 %v1493
        %1579 = vmatpush2.msra.mxu0 %v1492
        %1580 = vmatprep.subr.mxu0 %v1491
        %1581 = vmatpush2.msra.mxu0 %v1490
        %1582 = vmatprep.subr.mxu0 %v1489
        %1583 = vmatpush2.msra.mxu0 %v1488
        %1584 = vmatprep.subr.mxu0 %v1487
        %1585 = vmatpush2.msra.mxu0 %v1486
        %1586 = vmatprep.mubr.f32.mxu0 %v1520
        %1587 = vmatmul.mubr.f32.gmra.mxu0 %v1518
        %v1588 = vpop.f32.mrf.mxu0
        %v1589 = vadd.f32 0.0, %v1588
        %v1590 = vpop.f32.mrf.mxu0
        %v1591 = vadd.f32 0.0, %v1590
        %1592 = vdwg.mxu0
        %v1595 = vcombine.low %v1589, %v1591
        %1597 = vst [vmem:[%s277] sm:$0xff] %v1595
        %v1598 = vsub.f32 %v1589, %v306
        %v1599 = vsub.f32 %v1591, %v340
        %v1600 = vmul.f32 %v1598, %v1598
        %v1601 = vmul.f32 %v1599, %v1599
        %vm1602 = vcmask 1043456
        %v1603 = vsel %vm1602, %v1600, 0.0
        %v1604 = vrot.slane %v1603, 4
        %v1605 = vadd.f32 %v1603, %v1604
        %v1606 = vrot.slane %v1605, 2
        %v1607 = vadd.f32 %v1605, %v1606
        %v1608 = vrot.slane %v1607, 1
        %v1609 = vadd.f32 %v1607, %v1608
        %v1610 = vsel %vm1602, %v1601, 0.0
        %v1611 = vrot.slane %v1610, 4
        %v1612 = vadd.f32 %v1610, %v1611
        %v1613 = vrot.slane %v1612, 2
        %v1614 = vadd.f32 %v1612, %v1613
        %v1615 = vrot.slane %v1614, 1
        %v1616 = vadd.f32 %v1614, %v1615
        %v1619 = vcombine.low %v1609, %v1616
        %v1621 = vunpack.c.l.s4 1966171168
        %v1622 = vunpack.c.0.s8 %v1621
        %v1623 = vlaneseq
        %v1624 = vshrl.u32 %v1623, 7
        %v1625 = vsub.s32 %v1622, %v1624
        %v1626 = vrot.slane %v1619, %v1625
        %v1628 = vunpack.c.l.s4 1966171168
        %v1629 = vunpack.c.0.s8 %v1628
        %v1630 = vlaneseq
        %v1631 = vshrl.u32 %v1630, 7
        %v1632 = vsub.s32 %v1629, %v1631
        %v1633 = vrot.slane %v1626, %v1632
        %1635 = vst.msk [vmem:[%s291] sm:$0x3] %vm1324, %v1633
        %s1636 = sand.u32 %s137, 1
        %s1637 = scalar_lea.sflag [#allocation3], %s1636
        %s1638 = sand.u32 %s137, 1
        %s1639 = smul.addr %s1638, 8
        %s1640 = scalar_lea.vmem [#allocation2], %s1639
        %s1641 = sand.u32 %s24, 1
        %s1642 = scalar_lea.sflag [#allocation5], %s1641
        %s1643 = sand.u32 %s165, 1
        %s1644 = smul.addr %s1643, 2
        %s1645 = scalar_lea.vmem [#allocation4], %s1644
        %s1646 = sand.u32 %s24, 1
        %s1647 = scalar_lea.sflag [#allocation5], %s1646
        %s1648 = sand.u32 %s193, 1
        %s1649 = smul.addr %s1648, 2
        %s1650 = scalar_lea.vmem [#allocation6], %s1649
        // Predicated region
        $region37: #{tpu_custom_call.1} parent=35 // pred_check
          %p1651 = pneg %p147
        $region38: #{tpu_custom_call.1} parent=35 // pred_check_branch
          %1653 = sbr.rel (%p1651) target = $region40
        $region39: #{tpu_custom_call.1} parent=35 // pred_region
          %s1654 = smul.u32 2, %s29
          %s1656 = ssub.s32 128, 128
          %1657 = vsyncadd %s1637, %s1656
          %s1658 = smul.addr %s28, 2
          %s1659 = sadd.s32 %s1654, %s1658
          %s1660 = smul.addr %s1659, 64
          %s1661 = scalar_lea.hbm %s4, %s1660
          %s1663 = sshll.u32 %s1640, 4
          %s1664 = int_to_ptr.vmem [resolvable:$true] %s1663
          %1666 = dma.vmem_to_hbm [thread:$0]  %s1664, 128, %s1661, %s1637
        $region40: #{tpu_custom_call.1} parent=35 // pred_fallthru
          _
        // Predicated region
        $region41: #{tpu_custom_call.1} parent=35 // pred_check
          %p1667 = pneg %p175
        $region42: #{tpu_custom_call.1} parent=35 // pred_check_branch
          %1669 = sbr.rel (%p1667) target = $region44
        $region43: #{tpu_custom_call.1} parent=35 // pred_region
          %s1670 = smul.u32 2, %s29
          %s1672 = ssub.s32 32, 32
          %1673 = vsyncadd %s1642, %s1672
          %s1674 = smul.addr %s28, 2
          %s1675 = sadd.s32 %s1670, %s1674
          %s1676 = smul.addr %s1675, 16
          %s1677 = scalar_lea.hbm %s5, %s1676
          %s1679 = sshll.u32 %s1645, 4
          %s1680 = int_to_ptr.vmem [resolvable:$true] %s1679
          %1682 = dma.vmem_to_hbm [thread:$0]  %s1680, 32, %s1677, %s1642
        $region44: #{tpu_custom_call.1} parent=35 // pred_fallthru
          _
        // Predicated region
        $region45: #{tpu_custom_call.1} parent=35 // pred_check
          %p1683 = pneg %p203
        $region46: #{tpu_custom_call.1} parent=35 // pred_check_branch
          %1685 = sbr.rel (%p1683) target = $region48
        $region47: #{tpu_custom_call.1} parent=35 // pred_region
          %s1686 = smul.u32 2, %s29
          %s1688 = ssub.s32 32, 32
          %1689 = vsyncadd %s1647, %s1688
          %s1690 = smul.addr %s28, 2
          %s1691 = sadd.s32 %s1686, %s1690
          %s1692 = smul.addr %s1691, 16
          %s1693 = scalar_lea.hbm %s6, %s1692
          %s1695 = sshll.u32 %s1650, 4
          %s1696 = int_to_ptr.vmem [resolvable:$true] %s1695
          %1698 = dma.vmem_to_hbm [thread:$0]  %s1696, 32, %s1693, %s1647
        $region48: #{tpu_custom_call.1} parent=35 // pred_fallthru
          _
      $region36: #{tpu_custom_call.1} parent=5 // pred_fallthru
        _
      %p1699 = scmp.le.s32.totalorder 2, %s19
      // Predicated region
      $region49: #{tpu_custom_call.1} parent=5 // pred_check
        %p1700 = pneg %p1699
      $region50: #{tpu_custom_call.1} parent=5 // pred_check_branch
        %1702 = sbr.rel (%p1700) target = $region52
      $region51: #{tpu_custom_call.1} parent=5 // pred_region
        %s1703 = ssub.s32 %s19, 2
        // Predicated region
        $region53: #{tpu_custom_call.1} parent=51 // pred_check
          %p1704 = pneg %p153
        $region54: #{tpu_custom_call.1} parent=51 // pred_check_branch
          %1706 = sbr.rel (%p1704) target = $region56
        $region55: #{tpu_custom_call.1} parent=51 // pred_region
          %s1707 = sand.u32 %s138, 1
          %s1708 = scalar_lea.sflag [#allocation3], %s1707
          %s1709 = sand.u32 %s138, 1
          %s1710 = smul.addr %s1709, 8
          %s1711 = scalar_lea.vmem [#allocation2], %s1710
          %1712 = dma.done %s1708, 128
        $region56: #{tpu_custom_call.1} parent=51 // pred_fallthru
          _
        // Predicated region
        $region57: #{tpu_custom_call.1} parent=51 // pred_check
          %p1713 = pneg %p181
        $region58: #{tpu_custom_call.1} parent=51 // pred_check_branch
          %1715 = sbr.rel (%p1713) target = $region60
        $region59: #{tpu_custom_call.1} parent=51 // pred_region
          %s1716 = sand.u32 %s25, 1
          %s1717 = scalar_lea.sflag [#allocation5], %s1716
          %s1718 = sand.u32 %s166, 1
          %s1719 = smul.addr %s1718, 2
          %s1720 = scalar_lea.vmem [#allocation4], %s1719
          %1721 = dma.done %s1717, 32
        $region60: #{tpu_custom_call.1} parent=51 // pred_fallthru
          _
        // Predicated region
        $region61: #{tpu_custom_call.1} parent=51 // pred_check
          %p1722 = pneg %p209
        $region62: #{tpu_custom_call.1} parent=51 // pred_check_branch
          %1724 = sbr.rel (%p1722) target = $region64
        $region63: #{tpu_custom_call.1} parent=51 // pred_region
          %s1725 = sand.u32 %s25, 1
          %s1726 = scalar_lea.sflag [#allocation5], %s1725
          %s1727 = sand.u32 %s194, 1
          %s1728 = smul.addr %s1727, 2
          %s1729 = scalar_lea.vmem [#allocation6], %s1728
          %1730 = dma.done %s1726, 32
        $region64: #{tpu_custom_call.1} parent=51 // pred_fallthru
          _
      $region52: #{tpu_custom_call.1} parent=5 // pred_fallthru
        _
    $region6: #{tpu_custom_call.1} parent=1 // loop_footer
      %s23 = sadd.s32 1, %s19
    $region7: #{tpu_custom_call.1} parent=1 // loop_footer_branch
      %18 = sbr.rel target = $region3
    $region8: #{tpu_custom_call.1} parent=1 // loop_exit
      _
    %1731 = vsyncpa [#allocation3], 1
    %s1732 = scalar_lea.sflag [#allocation3], 1
    %1733 = vsyncpa %s1732, 1
    %1734 = vsyncpa [#allocation5], 1
    %s1735 = scalar_lea.sflag [#allocation5], 1
    %1736 = vsyncpa %s1735, 1

</llo_original>
